<compile_context>
chip_gen: v7x
topology: tpu7x:2x2x1
jax: 0.10.0
libtpu: 0.0.40
codegen_flags: <defaults>
</compile_context>

<pallas_src>
import functools
import math

import jax
import jax.numpy as jnp
from jax.experimental import pallas as pl
from jax.experimental.pallas import tpu as pltpu


# ----------------------------- Pallas kernel --------------------------------
def _mha_kernel(q_ref, k_ref, v_ref,
                wq_ref, bq_ref, wk_ref, bk_ref, wv_ref, bv_ref,
                wo_ref, bo_ref,
                o_ref,
                kT_scratch, v_scratch,
                *, num_heads, scale):
    """Fused MHA for one (batch, q-tile) grid step.

    q_ref       : (1, TS, E)  query tile
    k_ref/v_ref : (1, S,  E)  full keys / values for this batch element
    w*_ref      : (E, E) stored (in, out);  b*_ref : (1, E)
    o_ref       : (1, TS, E)
    kT_scratch  : (H, D, S)   cached projected K, pre-transposed per head
    v_scratch   : (H, S, D)   cached projected V per head
    """
    H = num_heads
    E = q_ref.shape[-1]
    D = E // H
    cdt = kT_scratch.dtype            # MXU operand dtype (== input dtype)

    # --- Project K / V once per batch element; cache per head in VMEM. ------
    @pl.when(pl.program_id(1) == 0)
    def _project_kv():
        k = (jnp.dot(k_ref[0], wk_ref[...], preferred_element_type=jnp.float32)
             + bk_ref[...]).astype(cdt)
        v = (jnp.dot(v_ref[0], wv_ref[...], preferred_element_type=jnp.float32)
             + bv_ref[...]).astype(cdt)
        for h in range(H):            # static unroll; once per batch element
            sl = slice(h * D, (h + 1) * D)
            kT_scratch[h] = k[:, sl].T          # (D, S): K^T cached once
            v_scratch[h] = v[:, sl]             # (S, D)

    # --- Per q-tile work (every grid step). ----------------------------------
    q = (jnp.dot(q_ref[0], wq_ref[...], preferred_element_type=jnp.float32)
         + bq_ref[...])
    q = (q * scale).astype(cdt)       # 1/sqrt(embed_dim) folded into Q once
    TS = q.shape[0]

    out = jnp.zeros((TS, E), jnp.float32) + bo_ref[...]
    for h in range(H):
        qh = q[:, h * D:(h + 1) * D]                                   # (TS, D)
        energy = jnp.dot(qh, kT_scratch[h],
                         preferred_element_type=jnp.float32)           # (TS, S)
        # Numerically stable softmax over keys, math kept in f32.
        m = jnp.max(energy, axis=-1, keepdims=True)
        p = jnp.exp(energy - m)
        denom = jnp.sum(p, axis=-1, keepdims=True)
        attn = (p * pl.reciprocal(denom, approx=True)).astype(cdt)     # (TS, S)
        ctx = jnp.dot(attn, v_scratch[h],
                      preferred_element_type=jnp.float32)              # (TS, D)
        # Head merge folded into the output projection (no concatenate).
        out = out + jnp.dot(ctx.astype(cdt), wo_ref[pl.ds(h * D, D), :],
                            preferred_element_type=jnp.float32)        # (TS, E)

    o_ref[0] = out.astype(o_ref.dtype)


# ------------------------------ JAX wrapper ----------------------------------
def _vmem_bytes_estimate(S, E, TS, itemsize):
    dbl = 2                                               # double-buffered DMA
    io_blocks = (TS * E + 2 * S * E + TS * E) * itemsize * dbl
    weights = (4 * E * E + 4 * E) * itemsize * dbl
    scratch = 2 * S * E * itemsize
    f32_tmp = (2 * S * E + 2 * TS * E + 3 * TS * S) * 4
    return io_blocks + weights + scratch + f32_tmp


@functools.partial(jax.jit, static_argnames=("num_heads", "q_tile"))
def mha_forward(query, key, value, params, *, num_heads, q_tile=None):
    """Reproduces MultiHeadAttention.forward(query, key, value, mask=None)."""
    B, S, E = query.shape
    assert E % num_heads == 0
    D = E // num_heads

    TS = q_tile if q_tile is not None else min(S, 512)
    assert S % TS == 0, "q_tile must divide the sequence length"
    grid = (B, S // TS)

    dt = query.dtype
    scale = 1.0 / math.sqrt(E)        # module divides by embed_dim ** 0.5
    kernel = functools.partial(_mha_kernel, num_heads=num_heads, scale=scale)

    # Weights / biases feed the MXU in the activation dtype (f32 accumulation
    # is requested in-kernel via preferred_element_type).
    p = {name: params[name].astype(dt) for name in
         ("wq", "bq", "wk", "bk", "wv", "bv", "wo", "bo")}

    q_spec = pl.BlockSpec((1, TS, E), lambda b, t: (b, t, 0))    # tiled Q / out
    kv_spec = pl.BlockSpec((1, S, E), lambda b, t: (b, 0, 0))    # per-batch K/V
    w_spec = pl.BlockSpec((E, E), lambda b, t: (0, 0))           # VMEM resident
    b_spec = pl.BlockSpec((1, E), lambda b, t: (0, 0))

    itemsize = jnp.dtype(dt).itemsize
    vmem_limit = int(min(max(32 * 1024 * 1024,
                             1.25 * _vmem_bytes_estimate(S, E, TS, itemsize)),
                         100 * 1024 * 1024))

    return pl.pallas_call(
        kernel,
        out_shape=jax.ShapeDtypeStruct((B, S, E), dt),
        grid=grid,
        in_specs=[
            q_spec, kv_spec, kv_spec,
            w_spec, b_spec,      # q_linear
            w_spec, b_spec,      # k_linear
            w_spec, b_spec,      # v_linear
            w_spec, b_spec,      # out
        ],
        out_specs=q_spec,
        scratch_shapes=[
            pltpu.VMEM((num_heads, D, S), dt),   # K^T cache (per head)
            pltpu.VMEM((num_heads, S, D), dt),   # V cache   (per head)
        ],
        compiler_params=pltpu.CompilerParams(
            # q-tile axis is "arbitrary": the projected-K/V scratch is written
            # at tile 0 and reused, in order, by the remaining tiles.
            dimension_semantics=("parallel", "arbitrary"),
            vmem_limit_bytes=vmem_limit),
    )(query, key, value,
      p["wq"], p["bq"], p["wk"], p["bk"], p["wv"], p["bv"], p["wo"], p["bo"])


# --------------------------- pure-JAX reference -------------------------------
def mha_reference(query, key, value, params, num_heads):
    B, S, E = query.shape
    D = E // num_heads

    def heads(x):
        return x.reshape(B, S, num_heads, D).transpose(0, 2, 1, 3)

    Q = heads(query @ params["wq"] + params["bq"])
    K = heads(key @ params["wk"] + params["bk"])
    V = heads(value @ params["wv"] + params["bv"])
    energy = jnp.einsum("bhqd,bhkd->bhqk", Q, K) / (E ** 0.5)
    attn = jax.nn.softmax(energy, axis=-1)
    out = jnp.einsum("bhqk,bhkd->bhqd", attn, V)
    out = out.transpose(0, 2, 1, 3).reshape(B, S, E)
    return out @ params["wo"] + params["bo"]


# ------------------------- deterministic parameters ---------------------------
def init_params(key, embed_dim):
    ks = jax.random.split(key, 8)
    bound = 1.0 / math.sqrt(embed_dim)

    def lin(kw, kb):
        # nn.Linear-style uniform init, stored (in, out) so kernel does x @ W + b.
        w = jax.random.uniform(kw, (embed_dim, embed_dim), jnp.float32, -bound, bound)
        b = jax.random.uniform(kb, (1, embed_dim), jnp.float32, -bound, bound)
        return w, b

    wq, bq = lin(ks[0], ks[1])
    wk, bk = lin(ks[2], ks[3])
    wv, bv = lin(ks[4], ks[5])
    wo, bo = lin(ks[6], ks[7])
    return dict(wq=wq, bq=bq, wk=wk, bk=bk, wv=wv, bv=bv, wo=wo, bo=bo)


def _check(name, out, ref, atol, rtol):
    err = float(jnp.max(jnp.abs(out - ref)))
    assert bool(jnp.allclose(out, ref, atol=atol, rtol=rtol)), (
        f"{name}: max abs err {err}")


# --------------------------------- main ---------------------------------------
if __name__ == "__main__":
    root = jax.random.PRNGKey(0)
    keys = jax.random.split(root, 8)

    # --- small config matching the module defaults ---------------------------
    batch, seq, embed_dim, num_heads = 2, 8, 32, 4
    params = init_params(keys[0], embed_dim)
    q = jax.random.normal(keys[1], (batch, seq, embed_dim), jnp.float32)
    k = jax.random.normal(keys[2], (batch, seq, embed_dim), jnp.float32)
    v = jax.random.normal(keys[3], (batch, seq, embed_dim), jnp.float32)

    out = jax.block_until_ready(
        mha_forward(q, k, v, params, num_heads=num_heads))
    assert out.shape == (batch, seq, embed_dim)
    _check("small", out, mha_reference(q, k, v, params, num_heads),
           atol=2e-2, rtol=2e-2)

    # --- multi-tile config: exercises the cached K/V path across q-tiles -----
    B2, S2, E2, H2 = 2, 256, 128, 4
    params2 = init_params(keys[4], E2)
    q2 = jax.random.normal(keys[5], (B2, S2, E2), jnp.float32)
    k2 = jax.random.normal(keys[6], (B2, S2, E2), jnp.float32)
    v2 = jax.random.normal(keys[7], (B2, S2, E2), jnp.float32)

    out2 = jax.block_until_ready(
        mha_forward(q2, k2, v2, params2, num_heads=H2, q_tile=64))
    _check("tiled", out2, mha_reference(q2, k2, v2, params2, H2),
           atol=2e-2, rtol=2e-2)

    print("KERNEL_OK")
</pallas_src>

<mosaic_0001>
module attributes {stable_mosaic.version = 11 : i64} {
  func.func @_mha_kernel(%arg0: i32, %arg1: i32, %arg2: memref<1x8x32xf32, #tpu.memory_space<vmem>>, %arg3: memref<1x8x32xf32, #tpu.memory_space<vmem>>, %arg4: memref<1x8x32xf32, #tpu.memory_space<vmem>>, %arg5: memref<32x32xf32, #tpu.memory_space<vmem>>, %arg6: memref<1x32xf32, #tpu.memory_space<vmem>>, %arg7: memref<32x32xf32, #tpu.memory_space<vmem>>, %arg8: memref<1x32xf32, #tpu.memory_space<vmem>>, %arg9: memref<32x32xf32, #tpu.memory_space<vmem>>, %arg10: memref<1x32xf32, #tpu.memory_space<vmem>>, %arg11: memref<32x32xf32, #tpu.memory_space<vmem>>, %arg12: memref<1x32xf32, #tpu.memory_space<vmem>>, %arg13: memref<1x8x32xf32, #tpu.memory_space<vmem>>, %arg14: memref<4x8x8xf32, #tpu.memory_space<vmem>>, %arg15: memref<4x8x8xf32, #tpu.memory_space<vmem>>) attributes {dimension_semantics = [#tpu.dimension_semantics<parallel>, #tpu.dimension_semantics<arbitrary>], iteration_bounds = array<i64: 2, 1>, scalar_prefetch = 0 : i64, scratch_operands = 2 : i64, tpu.core_type = #tpu.core_type<tc>, window_params = [{transform_indices = @transform_0, window_bounds = array<i64: 1, 8, 32>}, {transform_indices = @transform_1, window_bounds = array<i64: 1, 8, 32>}, {transform_indices = @transform_2, window_bounds = array<i64: 1, 8, 32>}, {pipeline_mode = #tpu.pipeline_mode<synchronous>, transform_indices = @transform_3, window_bounds = array<i64: 32, 32>}, {pipeline_mode = #tpu.pipeline_mode<synchronous>, transform_indices = @transform_4, window_bounds = array<i64: 1, 32>}, {pipeline_mode = #tpu.pipeline_mode<synchronous>, transform_indices = @transform_5, window_bounds = array<i64: 32, 32>}, {pipeline_mode = #tpu.pipeline_mode<synchronous>, transform_indices = @transform_6, window_bounds = array<i64: 1, 32>}, {pipeline_mode = #tpu.pipeline_mode<synchronous>, transform_indices = @transform_7, window_bounds = array<i64: 32, 32>}, {pipeline_mode = #tpu.pipeline_mode<synchronous>, transform_indices = @transform_8, window_bounds = array<i64: 1, 32>}, {pipeline_mode = #tpu.pipeline_mode<synchronous>, transform_indices = @transform_9, window_bounds = array<i64: 32, 32>}, {pipeline_mode = #tpu.pipeline_mode<synchronous>, transform_indices = @transform_10, window_bounds = array<i64: 1, 32>}, {transform_indices = @transform_11, window_bounds = array<i64: 1, 8, 32>}]} {
    %c0_i32 = arith.constant 0 : i32
    %0 = arith.cmpi eq, %arg1, %c0_i32 : i32
    %1 = arith.extui %0 : i1 to i32
    %c0_i32_0 = arith.constant 0 : i32
    %2 = arith.cmpi ne, %1, %c0_i32_0 : i32
    scf.if %2 {
      %c0_60 = arith.constant 0 : index
      %c0_61 = arith.constant 0 : index
      %c0_62 = arith.constant 0 : index
      %99 = vector.load %arg3[%c0_60, %c0_61, %c0_62] : memref<1x8x32xf32, #tpu.memory_space<vmem>>, vector<1x8x32xf32>
      %100 = vector.shape_cast %99 : vector<1x8x32xf32> to vector<8x32xf32>
      %c0_63 = arith.constant 0 : index
      %c0_64 = arith.constant 0 : index
      %101 = vector.load %arg7[%c0_63, %c0_64] : memref<32x32xf32, #tpu.memory_space<vmem>>, vector<32x32xf32>
      %cst_65 = arith.constant dense<0.000000e+00> : vector<8x32xf32>
      %102 = tpu.matmul %100, %101, %cst_65 {dimension_numbers = #tpu.dot_dimension_numbers<[1], [0], [0], [1], [0, 0, 1, 1], [], []>} : vector<8x32xf32>, vector<32x32xf32>, vector<8x32xf32> -> vector<8x32xf32>
      %c0_66 = arith.constant 0 : index
      %c0_67 = arith.constant 0 : index
      %103 = vector.load %arg8[%c0_66, %c0_67] : memref<1x32xf32, #tpu.memory_space<vmem>>, vector<1x32xf32>
      %104 = vector.broadcast %103 : vector<1x32xf32> to vector<8x32xf32>
      %105 = arith.addf %102, %104 : vector<8x32xf32>
      %c0_68 = arith.constant 0 : index
      %c0_69 = arith.constant 0 : index
      %c0_70 = arith.constant 0 : index
      %106 = vector.load %arg4[%c0_68, %c0_69, %c0_70] : memref<1x8x32xf32, #tpu.memory_space<vmem>>, vector<1x8x32xf32>
      %107 = vector.shape_cast %106 : vector<1x8x32xf32> to vector<8x32xf32>
      %c0_71 = arith.constant 0 : index
      %c0_72 = arith.constant 0 : index
      %108 = vector.load %arg9[%c0_71, %c0_72] : memref<32x32xf32, #tpu.memory_space<vmem>>, vector<32x32xf32>
      %cst_73 = arith.constant dense<0.000000e+00> : vector<8x32xf32>
      %109 = tpu.matmul %107, %108, %cst_73 {dimension_numbers = #tpu.dot_dimension_numbers<[1], [0], [0], [1], [0, 0, 1, 1], [], []>} : vector<8x32xf32>, vector<32x32xf32>, vector<8x32xf32> -> vector<8x32xf32>
      %c0_74 = arith.constant 0 : index
      %c0_75 = arith.constant 0 : index
      %110 = vector.load %arg10[%c0_74, %c0_75] : memref<1x32xf32, #tpu.memory_space<vmem>>, vector<1x32xf32>
      %111 = vector.broadcast %110 : vector<1x32xf32> to vector<8x32xf32>
      %112 = arith.addf %109, %111 : vector<8x32xf32>
      %113 = vector.extract_strided_slice %105 {offsets = [0, 0], sizes = [8, 8], strides = [1, 1]} : vector<8x32xf32> to vector<8x8xf32>
      %114 = tpu.transpose %113, [1, 0] : vector<8x8xf32> -> vector<8x8xf32>
      %c0_76 = arith.constant 0 : index
      %c0_77 = arith.constant 0 : index
      %c0_78 = arith.constant 0 : index
      %115 = vector.load %arg14[%c0_76, %c0_77, %c0_78] : memref<4x8x8xf32, #tpu.memory_space<vmem>>, vector<1x8x8xf32>
      %116 = vector.shape_cast %115 : vector<1x8x8xf32> to vector<8x8xf32>
      %117 = vector.shape_cast %114 : vector<8x8xf32> to vector<1x8x8xf32>
      tpu.vector_store %arg14[%c0_76, %c0_77, %c0_78], %117 {strides = array<i32>} : memref<4x8x8xf32, #tpu.memory_space<vmem>>, vector<1x8x8xf32>,
      %118 = vector.extract_strided_slice %112 {offsets = [0, 0], sizes = [8, 8], strides = [1, 1]} : vector<8x32xf32> to vector<8x8xf32>
      %c0_79 = arith.constant 0 : index
      %c0_80 = arith.constant 0 : index
      %c0_81 = arith.constant 0 : index
      %119 = vector.load %arg15[%c0_79, %c0_80, %c0_81] : memref<4x8x8xf32, #tpu.memory_space<vmem>>, vector<1x8x8xf32>
      %120 = vector.shape_cast %119 : vector<1x8x8xf32> to vector<8x8xf32>
      %121 = vector.shape_cast %118 : vector<8x8xf32> to vector<1x8x8xf32>
      tpu.vector_store %arg15[%c0_79, %c0_80, %c0_81], %121 {strides = array<i32>} : memref<4x8x8xf32, #tpu.memory_space<vmem>>, vector<1x8x8xf32>,
      %122 = vector.extract_strided_slice %105 {offsets = [0, 8], sizes = [8, 8], strides = [1, 1]} : vector<8x32xf32> to vector<8x8xf32>
      %123 = tpu.transpose %122, [1, 0] : vector<8x8xf32> -> vector<8x8xf32>
      %c1_82 = arith.constant 1 : index
      %c0_83 = arith.constant 0 : index
      %c0_84 = arith.constant 0 : index
      %124 = vector.load %arg14[%c1_82, %c0_83, %c0_84] : memref<4x8x8xf32, #tpu.memory_space<vmem>>, vector<1x8x8xf32>
      %125 = vector.shape_cast %124 : vector<1x8x8xf32> to vector<8x8xf32>
      %126 = vector.shape_cast %123 : vector<8x8xf32> to vector<1x8x8xf32>
      tpu.vector_store %arg14[%c1_82, %c0_83, %c0_84], %126 {strides = array<i32>} : memref<4x8x8xf32, #tpu.memory_space<vmem>>, vector<1x8x8xf32>,
      %127 = vector.extract_strided_slice %112 {offsets = [0, 8], sizes = [8, 8], strides = [1, 1]} : vector<8x32xf32> to vector<8x8xf32>
      %c1_85 = arith.constant 1 : index
      %c0_86 = arith.constant 0 : index
      %c0_87 = arith.constant 0 : index
      %128 = vector.load %arg15[%c1_85, %c0_86, %c0_87] : memref<4x8x8xf32, #tpu.memory_space<vmem>>, vector<1x8x8xf32>
      %129 = vector.shape_cast %128 : vector<1x8x8xf32> to vector<8x8xf32>
      %130 = vector.shape_cast %127 : vector<8x8xf32> to vector<1x8x8xf32>
      tpu.vector_store %arg15[%c1_85, %c0_86, %c0_87], %130 {strides = array<i32>} : memref<4x8x8xf32, #tpu.memory_space<vmem>>, vector<1x8x8xf32>,
      %131 = vector.extract_strided_slice %105 {offsets = [0, 16], sizes = [8, 8], strides = [1, 1]} : vector<8x32xf32> to vector<8x8xf32>
      %132 = tpu.transpose %131, [1, 0] : vector<8x8xf32> -> vector<8x8xf32>
      %c2_88 = arith.constant 2 : index
      %c0_89 = arith.constant 0 : index
      %c0_90 = arith.constant 0 : index
      %133 = vector.load %arg14[%c2_88, %c0_89, %c0_90] : memref<4x8x8xf32, #tpu.memory_space<vmem>>, vector<1x8x8xf32>
      %134 = vector.shape_cast %133 : vector<1x8x8xf32> to vector<8x8xf32>
      %135 = vector.shape_cast %132 : vector<8x8xf32> to vector<1x8x8xf32>
      tpu.vector_store %arg14[%c2_88, %c0_89, %c0_90], %135 {strides = array<i32>} : memref<4x8x8xf32, #tpu.memory_space<vmem>>, vector<1x8x8xf32>,
      %136 = vector.extract_strided_slice %112 {offsets = [0, 16], sizes = [8, 8], strides = [1, 1]} : vector<8x32xf32> to vector<8x8xf32>
      %c2_91 = arith.constant 2 : index
      %c0_92 = arith.constant 0 : index
      %c0_93 = arith.constant 0 : index
      %137 = vector.load %arg15[%c2_91, %c0_92, %c0_93] : memref<4x8x8xf32, #tpu.memory_space<vmem>>, vector<1x8x8xf32>
      %138 = vector.shape_cast %137 : vector<1x8x8xf32> to vector<8x8xf32>
      %139 = vector.shape_cast %136 : vector<8x8xf32> to vector<1x8x8xf32>
      tpu.vector_store %arg15[%c2_91, %c0_92, %c0_93], %139 {strides = array<i32>} : memref<4x8x8xf32, #tpu.memory_space<vmem>>, vector<1x8x8xf32>,
      %140 = vector.extract_strided_slice %105 {offsets = [0, 24], sizes = [8, 8], strides = [1, 1]} : vector<8x32xf32> to vector<8x8xf32>
      %141 = tpu.transpose %140, [1, 0] : vector<8x8xf32> -> vector<8x8xf32>
      %c3_94 = arith.constant 3 : index
      %c0_95 = arith.constant 0 : index
      %c0_96 = arith.constant 0 : index
      %142 = vector.load %arg14[%c3_94, %c0_95, %c0_96] : memref<4x8x8xf32, #tpu.memory_space<vmem>>, vector<1x8x8xf32>
      %143 = vector.shape_cast %142 : vector<1x8x8xf32> to vector<8x8xf32>
      %144 = vector.shape_cast %141 : vector<8x8xf32> to vector<1x8x8xf32>
      tpu.vector_store %arg14[%c3_94, %c0_95, %c0_96], %144 {strides = array<i32>} : memref<4x8x8xf32, #tpu.memory_space<vmem>>, vector<1x8x8xf32>,
      %145 = vector.extract_strided_slice %112 {offsets = [0, 24], sizes = [8, 8], strides = [1, 1]} : vector<8x32xf32> to vector<8x8xf32>
      %c3_97 = arith.constant 3 : index
      %c0_98 = arith.constant 0 : index
      %c0_99 = arith.constant 0 : index
      %146 = vector.load %arg15[%c3_97, %c0_98, %c0_99] : memref<4x8x8xf32, #tpu.memory_space<vmem>>, vector<1x8x8xf32>
      %147 = vector.shape_cast %146 : vector<1x8x8xf32> to vector<8x8xf32>
      %148 = vector.shape_cast %145 : vector<8x8xf32> to vector<1x8x8xf32>
      tpu.vector_store %arg15[%c3_97, %c0_98, %c0_99], %148 {strides = array<i32>} : memref<4x8x8xf32, #tpu.memory_space<vmem>>, vector<1x8x8xf32>,
    } else {
    }
    %c0 = arith.constant 0 : index
    %c0_1 = arith.constant 0 : index
    %c0_2 = arith.constant 0 : index
    %3 = vector.load %arg2[%c0, %c0_1, %c0_2] : memref<1x8x32xf32, #tpu.memory_space<vmem>>, vector<1x8x32xf32>
    %4 = vector.shape_cast %3 : vector<1x8x32xf32> to vector<8x32xf32>
    %c0_3 = arith.constant 0 : index
    %c0_4 = arith.constant 0 : index
    %5 = vector.load %arg5[%c0_3, %c0_4] : memref<32x32xf32, #tpu.memory_space<vmem>>, vector<32x32xf32>
    %cst = arith.constant dense<0.000000e+00> : vector<8x32xf32>
    %6 = tpu.matmul %4, %5, %cst {dimension_numbers = #tpu.dot_dimension_numbers<[1], [0], [0], [1], [0, 0, 1, 1], [], []>} : vector<8x32xf32>, vector<32x32xf32>, vector<8x32xf32> -> vector<8x32xf32>
    %c0_5 = arith.constant 0 : index
    %c0_6 = arith.constant 0 : index
    %7 = vector.load %arg6[%c0_5, %c0_6] : memref<1x32xf32, #tpu.memory_space<vmem>>, vector<1x32xf32>
    %8 = vector.broadcast %7 : vector<1x32xf32> to vector<8x32xf32>
    %9 = arith.addf %6, %8 : vector<8x32xf32>
    %cst_7 = arith.constant 0.176776692 : f32
    %10 = vector.broadcast %cst_7 : f32 to vector<8x32xf32>
    %11 = arith.mulf %9, %10 : vector<8x32xf32>
    %cst_8 = arith.constant 0.000000e+00 : f32
    %12 = vector.broadcast %cst_8 : f32 to vector<8x32xf32>
    %c0_9 = arith.constant 0 : index
    %c0_10 = arith.constant 0 : index
    %13 = vector.load %arg12[%c0_9, %c0_10] : memref<1x32xf32, #tpu.memory_space<vmem>>, vector<1x32xf32>
    %14 = vector.broadcast %13 : vector<1x32xf32> to vector<8x32xf32>
    %15 = arith.addf %12, %14 : vector<8x32xf32>
    %16 = vector.extract_strided_slice %11 {offsets = [0, 0], sizes = [8, 8], strides = [1, 1]} : vector<8x32xf32> to vector<8x8xf32>
    %c0_11 = arith.constant 0 : index
    %c0_12 = arith.constant 0 : index
    %c0_13 = arith.constant 0 : index
    %17 = vector.load %arg14[%c0_11, %c0_12, %c0_13] : memref<4x8x8xf32, #tpu.memory_space<vmem>>, vector<1x8x8xf32>
    %18 = vector.shape_cast %17 : vector<1x8x8xf32> to vector<8x8xf32>
    %cst_14 = arith.constant dense<0.000000e+00> : vector<8x8xf32>
    %19 = tpu.matmul %16, %18, %cst_14 {dimension_numbers = #tpu.dot_dimension_numbers<[1], [0], [0], [1], [0, 0, 1, 1], [], []>} : vector<8x8xf32>, vector<8x8xf32>, vector<8x8xf32> -> vector<8x8xf32>
    %cst_15 = arith.constant dense<0xFF800000> : vector<8xf32>
    %20 = vector.multi_reduction <maximumf>, %19, %cst_15 [1] : vector<8x8xf32> to vector<8xf32>
    %21 = vector.shape_cast %20 : vector<8xf32> to vector<8x1xf32>
    %22 = vector.broadcast %21 : vector<8x1xf32> to vector<8x8xf32>
    %23 = arith.subf %19, %22 : vector<8x8xf32>
    %24 = math.exp %23 : vector<8x8xf32>
    %cst_16 = arith.constant dense<0.000000e+00> : vector<8xf32>
    %25 = vector.multi_reduction <add>, %24, %cst_16 [1] : vector<8x8xf32> to vector<8xf32>
    %26 = vector.shape_cast %25 : vector<8xf32> to vector<8x1xf32>
    %27 = tpu.reciprocal %26 {approx = true} : vector<8x1xf32> -> vector<8x1xf32>
    %28 = vector.broadcast %27 : vector<8x1xf32> to vector<8x8xf32>
    %29 = arith.mulf %24, %28 : vector<8x8xf32>
    %c0_17 = arith.constant 0 : index
    %c0_18 = arith.constant 0 : index
    %c0_19 = arith.constant 0 : index
    %30 = vector.load %arg15[%c0_17, %c0_18, %c0_19] : memref<4x8x8xf32, #tpu.memory_space<vmem>>, vector<1x8x8xf32>
    %31 = vector.shape_cast %30 : vector<1x8x8xf32> to vector<8x8xf32>
    %cst_20 = arith.constant dense<0.000000e+00> : vector<8x8xf32>
    %32 = tpu.matmul %29, %31, %cst_20 {dimension_numbers = #tpu.dot_dimension_numbers<[1], [0], [0], [1], [0, 0, 1, 1], [], []>} : vector<8x8xf32>, vector<8x8xf32>, vector<8x8xf32> -> vector<8x8xf32>
    %c0_21 = arith.constant 0 : index
    %c0_22 = arith.constant 0 : index
    %33 = vector.load %arg11[%c0_21, %c0_22] : memref<32x32xf32, #tpu.memory_space<vmem>>, vector<8x32xf32>
    %cst_23 = arith.constant dense<0.000000e+00> : vector<8x32xf32>
    %34 = tpu.matmul %32, %33, %cst_23 {dimension_numbers = #tpu.dot_dimension_numbers<[1], [0], [0], [1], [0, 0, 1, 1], [], []>} : vector<8x8xf32>, vector<8x32xf32>, vector<8x32xf32> -> vector<8x32xf32>
    %35 = arith.addf %15, %34 : vector<8x32xf32>
    %36 = vector.extract_strided_slice %11 {offsets = [0, 8], sizes = [8, 8], strides = [1, 1]} : vector<8x32xf32> to vector<8x8xf32>
    %c1 = arith.constant 1 : index
    %c0_24 = arith.constant 0 : index
    %c0_25 = arith.constant 0 : index
    %37 = vector.load %arg14[%c1, %c0_24, %c0_25] : memref<4x8x8xf32, #tpu.memory_space<vmem>>, vector<1x8x8xf32>
    %38 = vector.shape_cast %37 : vector<1x8x8xf32> to vector<8x8xf32>
    %cst_26 = arith.constant dense<0.000000e+00> : vector<8x8xf32>
    %39 = tpu.matmul %36, %38, %cst_26 {dimension_numbers = #tpu.dot_dimension_numbers<[1], [0], [0], [1], [0, 0, 1, 1], [], []>} : vector<8x8xf32>, vector<8x8xf32>, vector<8x8xf32> -> vector<8x8xf32>
    %cst_27 = arith.constant dense<0xFF800000> : vector<8xf32>
    %40 = vector.multi_reduction <maximumf>, %39, %cst_27 [1] : vector<8x8xf32> to vector<8xf32>
    %41 = vector.shape_cast %40 : vector<8xf32> to vector<8x1xf32>
    %42 = vector.broadcast %41 : vector<8x1xf32> to vector<8x8xf32>
    %43 = arith.subf %39, %42 : vector<8x8xf32>
    %44 = math.exp %43 : vector<8x8xf32>
    %cst_28 = arith.constant dense<0.000000e+00> : vector<8xf32>
    %45 = vector.multi_reduction <add>, %44, %cst_28 [1] : vector<8x8xf32> to vector<8xf32>
    %46 = vector.shape_cast %45 : vector<8xf32> to vector<8x1xf32>
    %47 = tpu.reciprocal %46 {approx = true} : vector<8x1xf32> -> vector<8x1xf32>
    %48 = vector.broadcast %47 : vector<8x1xf32> to vector<8x8xf32>
    %49 = arith.mulf %44, %48 : vector<8x8xf32>
    %c1_29 = arith.constant 1 : index
    %c0_30 = arith.constant 0 : index
    %c0_31 = arith.constant 0 : index
    %50 = vector.load %arg15[%c1_29, %c0_30, %c0_31] : memref<4x8x8xf32, #tpu.memory_space<vmem>>, vector<1x8x8xf32>
    %51 = vector.shape_cast %50 : vector<1x8x8xf32> to vector<8x8xf32>
    %cst_32 = arith.constant dense<0.000000e+00> : vector<8x8xf32>
    %52 = tpu.matmul %49, %51, %cst_32 {dimension_numbers = #tpu.dot_dimension_numbers<[1], [0], [0], [1], [0, 0, 1, 1], [], []>} : vector<8x8xf32>, vector<8x8xf32>, vector<8x8xf32> -> vector<8x8xf32>
    %c8 = arith.constant 8 : index
    %c0_33 = arith.constant 0 : index
    %53 = vector.load %arg11[%c8, %c0_33] : memref<32x32xf32, #tpu.memory_space<vmem>>, vector<8x32xf32>
    %cst_34 = arith.constant dense<0.000000e+00> : vector<8x32xf32>
    %54 = tpu.matmul %52, %53, %cst_34 {dimension_numbers = #tpu.dot_dimension_numbers<[1], [0], [0], [1], [0, 0, 1, 1], [], []>} : vector<8x8xf32>, vector<8x32xf32>, vector<8x32xf32> -> vector<8x32xf32>
    %55 = arith.addf %35, %54 : vector<8x32xf32>
    %56 = vector.extract_strided_slice %11 {offsets = [0, 16], sizes = [8, 8], strides = [1, 1]} : vector<8x32xf32> to vector<8x8xf32>
    %c2 = arith.constant 2 : index
    %c0_35 = arith.constant 0 : index
    %c0_36 = arith.constant 0 : index
    %57 = vector.load %arg14[%c2, %c0_35, %c0_36] : memref<4x8x8xf32, #tpu.memory_space<vmem>>, vector<1x8x8xf32>
    %58 = vector.shape_cast %57 : vector<1x8x8xf32> to vector<8x8xf32>
    %cst_37 = arith.constant dense<0.000000e+00> : vector<8x8xf32>
    %59 = tpu.matmul %56, %58, %cst_37 {dimension_numbers = #tpu.dot_dimension_numbers<[1], [0], [0], [1], [0, 0, 1, 1], [], []>} : vector<8x8xf32>, vector<8x8xf32>, vector<8x8xf32> -> vector<8x8xf32>
    %cst_38 = arith.constant dense<0xFF800000> : vector<8xf32>
    %60 = vector.multi_reduction <maximumf>, %59, %cst_38 [1] : vector<8x8xf32> to vector<8xf32>
    %61 = vector.shape_cast %60 : vector<8xf32> to vector<8x1xf32>
    %62 = vector.broadcast %61 : vector<8x1xf32> to vector<8x8xf32>
    %63 = arith.subf %59, %62 : vector<8x8xf32>
    %64 = math.exp %63 : vector<8x8xf32>
    %cst_39 = arith.constant dense<0.000000e+00> : vector<8xf32>
    %65 = vector.multi_reduction <add>, %64, %cst_39 [1] : vector<8x8xf32> to vector<8xf32>
    %66 = vector.shape_cast %65 : vector<8xf32> to vector<8x1xf32>
    %67 = tpu.reciprocal %66 {approx = true} : vector<8x1xf32> -> vector<8x1xf32>
    %68 = vector.broadcast %67 : vector<8x1xf32> to vector<8x8xf32>
    %69 = arith.mulf %64, %68 : vector<8x8xf32>
    %c2_40 = arith.constant 2 : index
    %c0_41 = arith.constant 0 : index
    %c0_42 = arith.constant 0 : index
    %70 = vector.load %arg15[%c2_40, %c0_41, %c0_42] : memref<4x8x8xf32, #tpu.memory_space<vmem>>, vector<1x8x8xf32>
    %71 = vector.shape_cast %70 : vector<1x8x8xf32> to vector<8x8xf32>
    %cst_43 = arith.constant dense<0.000000e+00> : vector<8x8xf32>
    %72 = tpu.matmul %69, %71, %cst_43 {dimension_numbers = #tpu.dot_dimension_numbers<[1], [0], [0], [1], [0, 0, 1, 1], [], []>} : vector<8x8xf32>, vector<8x8xf32>, vector<8x8xf32> -> vector<8x8xf32>
    %c16 = arith.constant 16 : index
    %c0_44 = arith.constant 0 : index
    %73 = vector.load %arg11[%c16, %c0_44] : memref<32x32xf32, #tpu.memory_space<vmem>>, vector<8x32xf32>
    %cst_45 = arith.constant dense<0.000000e+00> : vector<8x32xf32>
    %74 = tpu.matmul %72, %73, %cst_45 {dimension_numbers = #tpu.dot_dimension_numbers<[1], [0], [0], [1], [0, 0, 1, 1], [], []>} : vector<8x8xf32>, vector<8x32xf32>, vector<8x32xf32> -> vector<8x32xf32>
    %75 = arith.addf %55, %74 : vector<8x32xf32>
    %76 = vector.extract_strided_slice %11 {offsets = [0, 24], sizes = [8, 8], strides = [1, 1]} : vector<8x32xf32> to vector<8x8xf32>
    %c3 = arith.constant 3 : index
    %c0_46 = arith.constant 0 : index
    %c0_47 = arith.constant 0 : index
    %77 = vector.load %arg14[%c3, %c0_46, %c0_47] : memref<4x8x8xf32, #tpu.memory_space<vmem>>, vector<1x8x8xf32>
    %78 = vector.shape_cast %77 : vector<1x8x8xf32> to vector<8x8xf32>
    %cst_48 = arith.constant dense<0.000000e+00> : vector<8x8xf32>
    %79 = tpu.matmul %76, %78, %cst_48 {dimension_numbers = #tpu.dot_dimension_numbers<[1], [0], [0], [1], [0, 0, 1, 1], [], []>} : vector<8x8xf32>, vector<8x8xf32>, vector<8x8xf32> -> vector<8x8xf32>
    %cst_49 = arith.constant dense<0xFF800000> : vector<8xf32>
    %80 = vector.multi_reduction <maximumf>, %79, %cst_49 [1] : vector<8x8xf32> to vector<8xf32>
    %81 = vector.shape_cast %80 : vector<8xf32> to vector<8x1xf32>
    %82 = vector.broadcast %81 : vector<8x1xf32> to vector<8x8xf32>
    %83 = arith.subf %79, %82 : vector<8x8xf32>
    %84 = math.exp %83 : vector<8x8xf32>
    %cst_50 = arith.constant dense<0.000000e+00> : vector<8xf32>
    %85 = vector.multi_reduction <add>, %84, %cst_50 [1] : vector<8x8xf32> to vector<8xf32>
    %86 = vector.shape_cast %85 : vector<8xf32> to vector<8x1xf32>
    %87 = tpu.reciprocal %86 {approx = true} : vector<8x1xf32> -> vector<8x1xf32>
    %88 = vector.broadcast %87 : vector<8x1xf32> to vector<8x8xf32>
    %89 = arith.mulf %84, %88 : vector<8x8xf32>
    %c3_51 = arith.constant 3 : index
    %c0_52 = arith.constant 0 : index
    %c0_53 = arith.constant 0 : index
    %90 = vector.load %arg15[%c3_51, %c0_52, %c0_53] : memref<4x8x8xf32, #tpu.memory_space<vmem>>, vector<1x8x8xf32>
    %91 = vector.shape_cast %90 : vector<1x8x8xf32> to vector<8x8xf32>
    %cst_54 = arith.constant dense<0.000000e+00> : vector<8x8xf32>
    %92 = tpu.matmul %89, %91, %cst_54 {dimension_numbers = #tpu.dot_dimension_numbers<[1], [0], [0], [1], [0, 0, 1, 1], [], []>} : vector<8x8xf32>, vector<8x8xf32>, vector<8x8xf32> -> vector<8x8xf32>
    %c24 = arith.constant 24 : index
    %c0_55 = arith.constant 0 : index
    %93 = vector.load %arg11[%c24, %c0_55] : memref<32x32xf32, #tpu.memory_space<vmem>>, vector<8x32xf32>
    %cst_56 = arith.constant dense<0.000000e+00> : vector<8x32xf32>
    %94 = tpu.matmul %92, %93, %cst_56 {dimension_numbers = #tpu.dot_dimension_numbers<[1], [0], [0], [1], [0, 0, 1, 1], [], []>} : vector<8x8xf32>, vector<8x32xf32>, vector<8x32xf32> -> vector<8x32xf32>
    %95 = arith.addf %75, %94 : vector<8x32xf32>
    %c0_57 = arith.constant 0 : index
    %c0_58 = arith.constant 0 : index
    %c0_59 = arith.constant 0 : index
    %96 = vector.load %arg13[%c0_57, %c0_58, %c0_59] : memref<1x8x32xf32, #tpu.memory_space<vmem>>, vector<1x8x32xf32>
    %97 = vector.shape_cast %96 : vector<1x8x32xf32> to vector<8x32xf32>
    %98 = vector.shape_cast %95 : vector<8x32xf32> to vector<1x8x32xf32>
    tpu.vector_store %arg13[%c0_57, %c0_58, %c0_59], %98 {strides = array<i32>} : memref<1x8x32xf32, #tpu.memory_space<vmem>>, vector<1x8x32xf32>,
    return
  }
  func.func @transform_0(%arg0: i32, %arg1: i32) -> (i32, i32, i32) {
    %c0_i32 = arith.constant 0 : i32
    %c0_i32_0 = arith.constant 0 : i32
    return %arg0, %arg1, %c0_i32 : i32, i32, i32
  }
  func.func @transform_1(%arg0: i32, %arg1: i32) -> (i32, i32, i32) {
    %c0_i32 = arith.constant 0 : i32
    %c0_i32_0 = arith.constant 0 : i32
    %c0_i32_1 = arith.constant 0 : i32
    return %arg0, %c0_i32, %c0_i32_0 : i32, i32, i32
  }
  func.func @transform_2(%arg0: i32, %arg1: i32) -> (i32, i32, i32) {
    %c0_i32 = arith.constant 0 : i32
    %c0_i32_0 = arith.constant 0 : i32
    %c0_i32_1 = arith.constant 0 : i32
    return %arg0, %c0_i32, %c0_i32_0 : i32, i32, i32
  }
  func.func @transform_3(%arg0: i32, %arg1: i32) -> (i32, i32) {
    %c0_i32 = arith.constant 0 : i32
    %c0_i32_0 = arith.constant 0 : i32
    %c0_i32_1 = arith.constant 0 : i32
    return %c0_i32, %c0_i32_0 : i32, i32
  }
  func.func @transform_4(%arg0: i32, %arg1: i32) -> (i32, i32) {
    %c0_i32 = arith.constant 0 : i32
    %c0_i32_0 = arith.constant 0 : i32
    %c0_i32_1 = arith.constant 0 : i32
    return %c0_i32, %c0_i32_0 : i32, i32
  }
  func.func @transform_5(%arg0: i32, %arg1: i32) -> (i32, i32) {
    %c0_i32 = arith.constant 0 : i32
    %c0_i32_0 = arith.constant 0 : i32
    %c0_i32_1 = arith.constant 0 : i32
    return %c0_i32, %c0_i32_0 : i32, i32
  }
  func.func @transform_6(%arg0: i32, %arg1: i32) -> (i32, i32) {
    %c0_i32 = arith.constant 0 : i32
    %c0_i32_0 = arith.constant 0 : i32
    %c0_i32_1 = arith.constant 0 : i32
    return %c0_i32, %c0_i32_0 : i32, i32
  }
  func.func @transform_7(%arg0: i32, %arg1: i32) -> (i32, i32) {
    %c0_i32 = arith.constant 0 : i32
    %c0_i32_0 = arith.constant 0 : i32
    %c0_i32_1 = arith.constant 0 : i32
    return %c0_i32, %c0_i32_0 : i32, i32
  }
  func.func @transform_8(%arg0: i32, %arg1: i32) -> (i32, i32) {
    %c0_i32 = arith.constant 0 : i32
    %c0_i32_0 = arith.constant 0 : i32
    %c0_i32_1 = arith.constant 0 : i32
    return %c0_i32, %c0_i32_0 : i32, i32
  }
  func.func @transform_9(%arg0: i32, %arg1: i32) -> (i32, i32) {
    %c0_i32 = arith.constant 0 : i32
    %c0_i32_0 = arith.constant 0 : i32
    %c0_i32_1 = arith.constant 0 : i32
    return %c0_i32, %c0_i32_0 : i32, i32
  }
  func.func @transform_10(%arg0: i32, %arg1: i32) -> (i32, i32) {
    %c0_i32 = arith.constant 0 : i32
    %c0_i32_0 = arith.constant 0 : i32
    %c0_i32_1 = arith.constant 0 : i32
    return %c0_i32, %c0_i32_0 : i32, i32
  }
  func.func @transform_11(%arg0: i32, %arg1: i32) -> (i32, i32, i32) {
    %c0_i32 = arith.constant 0 : i32
    %c0_i32_0 = arith.constant 0 : i32
    return %arg0, %arg1, %c0_i32 : i32, i32, i32
  }
}

</mosaic_0001>

<llo_original>
// kernel: mha_forward.1
$region0: #{mha_forward.1}
  #allocation0 [shape = 'u32[]', space=smem, size = 0x4, offset = 0x4, fixed_abs, tag = 'smem constant byte address 0x4 - core index']
  #allocation1 [shape = 'u32[144,128]{1,0:T(1,128)}', space=vmem, size = 0x12000, scoped, tag = 'internal scratch']
  #allocation2 [shape = 'f32[4,8,8]{2,1,0:T(8,128)}', space=vmem, size = 0x4000, scoped, tag = 'scratch operand']
  #allocation3 [shape = 'f32[4,8,8]{2,1,0:T(8,128)}', space=vmem, size = 0x4000, scoped, tag = 'scratch operand']
  %s0 = inlined_call_operand.hbm [shape: f32[2,8,32], index: 0, kind: input, shape index: {}]
  %s1 = inlined_call_operand.hbm [shape: f32[2,8,32], index: 1, kind: input, shape index: {}]
  %s2 = inlined_call_operand.hbm [shape: f32[2,8,32], index: 2, kind: input, shape index: {}]
  %s3 = inlined_call_operand.vmem [shape: f32[32,32], index: 3, kind: input, shape index: {}]
  %s4 = inlined_call_operand.vmem [shape: f32[1,32], index: 4, kind: input, shape index: {}]
  %s5 = inlined_call_operand.hbm [shape: f32[32,32], index: 5, kind: input, shape index: {}]
  %s6 = inlined_call_operand.vmem [shape: f32[1,32], index: 6, kind: input, shape index: {}]
  %s7 = inlined_call_operand.hbm [shape: f32[32,32], index: 7, kind: input, shape index: {}]
  %s8 = inlined_call_operand.hbm [shape: f32[1,32], index: 8, kind: input, shape index: {}]
  %s9 = inlined_call_operand.hbm [shape: f32[32,32], index: 9, kind: input, shape index: {}]
  %s10 = inlined_call_operand.hbm [shape: f32[1,32], index: 10, kind: input, shape index: {}]
  %s11 = inlined_call_operand.hbm [shape: f32[2,8,32], index: 11, kind: output, shape index: {}]
  %s12 = sld [smem:[#allocation0]]
  $region113: #{mha_forward.1} parent=0
    _
  %s14 = ssub.s32 1, %s12
  %s15 = scalar_select 0, %s14, %s12
  $region1: #{mha_forward.1} parent=0
    #allocation4 [shape = 'u8[8192]{0}', space=vmem, size = 0x2000, scoped, tag = 'input window, operand 0']
    #allocation5 [shape = 's32[2]{0}', space=sflag, size = 0x8, scoped, tag = 'scoped memory for mha_forward.1']
    #allocation6 [shape = 's32[2]{0}', space=sflag, size = 0x8, scoped, tag = 'scoped memory for mha_forward.1']
    #allocation7 [shape = 'u8[8192]{0}', space=vmem, size = 0x2000, scoped, tag = 'input window, operand 1']
    #allocation8 [shape = 's32[2]{0}', space=sflag, size = 0x8, scoped, tag = 'scoped memory for mha_forward.1']
    #allocation9 [shape = 'u8[8192]{0}', space=vmem, size = 0x2000, scoped, tag = 'input window, operand 2']
    #allocation10 [shape = 'u8[16384]{0}', space=vmem, size = 0x4000, scoped, tag = 'input window, operand 5, single buffered']
    #allocation11 [shape = 's32[1]{0}', space=sflag, size = 0x4, scoped, tag = 'scoped memory for mha_forward.1']
    #allocation12 [shape = 'u8[16384]{0}', space=vmem, size = 0x4000, scoped, tag = 'input window, operand 7, single buffered']
    #allocation13 [shape = 'u8[512]{0}', space=vmem, size = 0x400, scoped, tag = 'input window, operand 8, single buffered']
    #allocation14 [shape = 's32[1]{0}', space=sflag, size = 0x4, scoped, tag = 'scoped memory for mha_forward.1']
    #allocation15 [shape = 'u8[16384]{0}', space=vmem, size = 0x4000, scoped, tag = 'input window, operand 9, single buffered']
    #allocation16 [shape = 'u8[512]{0}', space=vmem, size = 0x400, scoped, tag = 'input window, operand 10, single buffered']
    #allocation17 [shape = 's32[1]{0}', space=sflag, size = 0x4, scoped, tag = 'scoped memory for mha_forward.1']
    #allocation18 [shape = 'u8[8192]{0}', space=vmem, size = 0x2000, scoped, tag = 'output window, operand 0']
    %16 = vsyncpa [#allocation5], 0
    %s17 = scalar_lea.sflag [#allocation5], 1
    %18 = vsyncpa %s17, 0
    %19 = vsyncpa [#allocation8], 0
    %s20 = scalar_lea.sflag [#allocation8], 1
    %21 = vsyncpa %s20, 0
    %22 = vsyncpa [#allocation11], 0
    %23 = vsyncpa [#allocation14], 0
    %24 = vsyncpa [#allocation17], 0
    %25 = vsyncpa [#allocation6], 0
    %s26 = scalar_lea.sflag [#allocation6], 1
    %27 = vsyncpa %s26, 0
    loop: start=0, step=1, limit=4
    $region2: #{mha_forward.1} parent=1 // loop_pre_header
      _
    $region3: #{mha_forward.1} parent=1 // loop_header
      %s29 = sphi 0, %s33
      %p30 = scmp.ge.s32.totalorder %s29, 4
      %s36 = sphi 0, %s48
      %s37 = sphi 0, %s44
      %s38 = sphi 0, %s36
      %s39 = sphi 0, %s37
      %s40 = sphi 0, %s38
      %s41 = sphi 0, %s39
      %s53 = sphi 0, %s55
      %s56 = sphi 0, %s53
      %s57 = sphi 0, %s56
      %s73 = sphi 0, %s57
      %s79 = sphi 0, %s81
      %s82 = sphi 0, %s79
      %s83 = sphi 0, %s82
      %s99 = sphi 0, %s83
      %s105 = sphi 0, %s107
      %s108 = sphi 0, %s105
      %s109 = sphi 0, %s108
      %s125 = sphi 0, %s109
      %s129 = sphi 0, %s129
      %s131 = sphi 0, %s129
      %s132 = sphi 0, %s131
      %s146 = sphi 0, %s132
      %s150 = sphi 0, %s150
      %s152 = sphi 0, %s150
      %s153 = sphi 0, %s152
      %s167 = sphi 0, %s153
      %s171 = sphi 0, %s171
      %s173 = sphi 0, %s171
      %s174 = sphi 0, %s173
      %s188 = sphi 0, %s174
      %s192 = sphi 0, %s192
      %s194 = sphi 0, %s192
      %s195 = sphi 0, %s194
      %s209 = sphi 0, %s195
      %s213 = sphi 0, %s213
      %s215 = sphi 0, %s213
      %s216 = sphi 0, %s215
      %s230 = sphi 0, %s216
      %s234 = sphi 0, %s234
      %s236 = sphi 0, %s234
      %s237 = sphi 0, %s236
      %s251 = sphi 0, %s237
      %s255 = sphi 0, %s255
      %s257 = sphi 0, %s255
      %s258 = sphi 0, %s257
      %s272 = sphi 0, %s258
      %s276 = sphi 0, %s276
      %s278 = sphi 0, %s276
      %s279 = sphi 0, %s278
      %s293 = sphi 0, %s279
      %s301 = sphi 0, %s303
      %s304 = sphi 0, %s301
      %s305 = sphi 0, %s304
      %s321 = sphi 0, %s305
    $region4: #{mha_forward.1} parent=1 // loop_header_branch
      %32 = sbr.rel (%p30) target = $region8
    $region5: #{mha_forward.1} parent=1 // loop_body
      %s34 = ssub.s32 %s29, 1
      %s35 = ssub.s32 %s29, 2
      %s42 = sadd.s32 1, %s37
      %p43 = scmp.ge.s32.totalorder %s42, 1
      %s44 = scalar_select %p43, 0, %s42
      %s45 = sadd.s32 1, %s36
      %s46 = scalar_select %p43, %s45, %s36
      %p47 = scmp.ge.s32.totalorder %s46, 2
      %s48 = scalar_select %p47, 0, %s46
      %s49 = ssub.s32 %s36, %s48
      %s50 = ssub.s32 %s37, %s44
      %s51 = sor.u32 %s49, %s50
      %p52 = scmp.eq.s32.totalorder %s51, 0
      %s54 = sadd.s32 %s53, 1
      %s55 = scalar_select %p52, %s53, %s54
      %p58 = pneg %p52
      %p59 = scmp.eq.s32.totalorder %s29, 1
      %p60 = por %p58, %p59
      %p61 = scmp.ne.s32.totalorder %s53, %s56
      %p62 = scmp.eq.s32.totalorder %s29, 0
      %p63 = por %p61, %p62
      %p64 = scmp.ne.s32.totalorder %s53, %s56
      %p65 = scmp.eq.s32.totalorder %s34, 1
      %p66 = por %p64, %p65
      %p67 = scmp.ne.s32.totalorder %s56, %s57
      %p68 = scmp.eq.s32.totalorder %s34, 0
      %p69 = por %p67, %p68
      %p70 = scmp.ne.s32.totalorder %s56, %s57
      %p71 = scmp.eq.s32.totalorder %s35, 1
      %p72 = por %p70, %p71
      %p74 = scmp.ne.s32.totalorder %s57, %s73
      %p75 = scmp.eq.s32.totalorder %s35, 0
      %p76 = por %p74, %p75
      %s77 = ssub.s32 %s36, %s48
      %p78 = scmp.eq.s32.totalorder %s77, 0
      %s80 = sadd.s32 %s79, 1
      %s81 = scalar_select %p78, %s79, %s80
      %p84 = pneg %p78
      %p85 = scmp.eq.s32.totalorder %s29, 1
      %p86 = por %p84, %p85
      %p87 = scmp.ne.s32.totalorder %s79, %s82
      %p88 = scmp.eq.s32.totalorder %s29, 0
      %p89 = por %p87, %p88
      %p90 = scmp.ne.s32.totalorder %s79, %s82
      %p91 = scmp.eq.s32.totalorder %s34, 1
      %p92 = por %p90, %p91
      %p93 = scmp.ne.s32.totalorder %s82, %s83
      %p94 = scmp.eq.s32.totalorder %s34, 0
      %p95 = por %p93, %p94
      %p96 = scmp.ne.s32.totalorder %s82, %s83
      %p97 = scmp.eq.s32.totalorder %s35, 1
      %p98 = por %p96, %p97
      %p100 = scmp.ne.s32.totalorder %s83, %s99
      %p101 = scmp.eq.s32.totalorder %s35, 0
      %p102 = por %p100, %p101
      %s103 = ssub.s32 %s36, %s48
      %p104 = scmp.eq.s32.totalorder %s103, 0
      %s106 = sadd.s32 %s105, 1
      %s107 = scalar_select %p104, %s105, %s106
      %p110 = pneg %p104
      %p111 = scmp.eq.s32.totalorder %s29, 1
      %p112 = por %p110, %p111
      %p113 = scmp.ne.s32.totalorder %s105, %s108
      %p114 = scmp.eq.s32.totalorder %s29, 0
      %p115 = por %p113, %p114
      %p116 = scmp.ne.s32.totalorder %s105, %s108
      %p117 = scmp.eq.s32.totalorder %s34, 1
      %p118 = por %p116, %p117
      %p119 = scmp.ne.s32.totalorder %s108, %s109
      %p120 = scmp.eq.s32.totalorder %s34, 0
      %p121 = por %p119, %p120
      %p122 = scmp.ne.s32.totalorder %s108, %s109
      %p123 = scmp.eq.s32.totalorder %s35, 1
      %p124 = por %p122, %p123
      %p126 = scmp.ne.s32.totalorder %s109, %s125
      %p127 = scmp.eq.s32.totalorder %s35, 0
      %p128 = por %p126, %p127
      %s130 = sadd.s32 %s129, 1
      %p133 = scmp.eq.s32.totalorder %s29, 1
      %p134 = scmp.ne.s32.totalorder %s129, %s131
      %p135 = scmp.eq.s32.totalorder %s29, 0
      %p136 = por %p134, %p135
      %p137 = scmp.ne.s32.totalorder %s129, %s131
      %p138 = scmp.eq.s32.totalorder %s34, 1
      %p139 = por %p137, %p138
      %p140 = scmp.ne.s32.totalorder %s131, %s132
      %p141 = scmp.eq.s32.totalorder %s34, 0
      %p142 = por %p140, %p141
      %p143 = scmp.ne.s32.totalorder %s131, %s132
      %p144 = scmp.eq.s32.totalorder %s35, 1
      %p145 = por %p143, %p144
      %p147 = scmp.ne.s32.totalorder %s132, %s146
      %p148 = scmp.eq.s32.totalorder %s35, 0
      %p149 = por %p147, %p148
      %s151 = sadd.s32 %s150, 1
      %p154 = scmp.eq.s32.totalorder %s29, 1
      %p155 = scmp.ne.s32.totalorder %s150, %s152
      %p156 = scmp.eq.s32.totalorder %s29, 0
      %p157 = por %p155, %p156
      %p158 = scmp.ne.s32.totalorder %s150, %s152
      %p159 = scmp.eq.s32.totalorder %s34, 1
      %p160 = por %p158, %p159
      %p161 = scmp.ne.s32.totalorder %s152, %s153
      %p162 = scmp.eq.s32.totalorder %s34, 0
      %p163 = por %p161, %p162
      %p164 = scmp.ne.s32.totalorder %s152, %s153
      %p165 = scmp.eq.s32.totalorder %s35, 1
      %p166 = por %p164, %p165
      %p168 = scmp.ne.s32.totalorder %s153, %s167
      %p169 = scmp.eq.s32.totalorder %s35, 0
      %p170 = por %p168, %p169
      %s172 = sadd.s32 %s171, 1
      %p175 = scmp.eq.s32.totalorder %s29, 1
      %p176 = scmp.ne.s32.totalorder %s171, %s173
      %p177 = scmp.eq.s32.totalorder %s29, 0
      %p178 = por %p176, %p177
      %p179 = scmp.ne.s32.totalorder %s171, %s173
      %p180 = scmp.eq.s32.totalorder %s34, 1
      %p181 = por %p179, %p180
      %p182 = scmp.ne.s32.totalorder %s173, %s174
      %p183 = scmp.eq.s32.totalorder %s34, 0
      %p184 = por %p182, %p183
      %p185 = scmp.ne.s32.totalorder %s173, %s174
      %p186 = scmp.eq.s32.totalorder %s35, 1
      %p187 = por %p185, %p186
      %p189 = scmp.ne.s32.totalorder %s174, %s188
      %p190 = scmp.eq.s32.totalorder %s35, 0
      %p191 = por %p189, %p190
      %s193 = sadd.s32 %s192, 1
      %p196 = scmp.eq.s32.totalorder %s29, 1
      %p197 = scmp.ne.s32.totalorder %s192, %s194
      %p198 = scmp.eq.s32.totalorder %s29, 0
      %p199 = por %p197, %p198
      %p200 = scmp.ne.s32.totalorder %s192, %s194
      %p201 = scmp.eq.s32.totalorder %s34, 1
      %p202 = por %p200, %p201
      %p203 = scmp.ne.s32.totalorder %s194, %s195
      %p204 = scmp.eq.s32.totalorder %s34, 0
      %p205 = por %p203, %p204
      %p206 = scmp.ne.s32.totalorder %s194, %s195
      %p207 = scmp.eq.s32.totalorder %s35, 1
      %p208 = por %p206, %p207
      %p210 = scmp.ne.s32.totalorder %s195, %s209
      %p211 = scmp.eq.s32.totalorder %s35, 0
      %p212 = por %p210, %p211
      %s214 = sadd.s32 %s213, 1
      %p217 = scmp.eq.s32.totalorder %s29, 1
      %p218 = scmp.ne.s32.totalorder %s213, %s215
      %p219 = scmp.eq.s32.totalorder %s29, 0
      %p220 = por %p218, %p219
      %p221 = scmp.ne.s32.totalorder %s213, %s215
      %p222 = scmp.eq.s32.totalorder %s34, 1
      %p223 = por %p221, %p222
      %p224 = scmp.ne.s32.totalorder %s215, %s216
      %p225 = scmp.eq.s32.totalorder %s34, 0
      %p226 = por %p224, %p225
      %p227 = scmp.ne.s32.totalorder %s215, %s216
      %p228 = scmp.eq.s32.totalorder %s35, 1
      %p229 = por %p227, %p228
      %p231 = scmp.ne.s32.totalorder %s216, %s230
      %p232 = scmp.eq.s32.totalorder %s35, 0
      %p233 = por %p231, %p232
      %s235 = sadd.s32 %s234, 1
      %p238 = scmp.eq.s32.totalorder %s29, 1
      %p239 = scmp.ne.s32.totalorder %s234, %s236
      %p240 = scmp.eq.s32.totalorder %s29, 0
      %p241 = por %p239, %p240
      %p242 = scmp.ne.s32.totalorder %s234, %s236
      %p243 = scmp.eq.s32.totalorder %s34, 1
      %p244 = por %p242, %p243
      %p245 = scmp.ne.s32.totalorder %s236, %s237
      %p246 = scmp.eq.s32.totalorder %s34, 0
      %p247 = por %p245, %p246
      %p248 = scmp.ne.s32.totalorder %s236, %s237
      %p249 = scmp.eq.s32.totalorder %s35, 1
      %p250 = por %p248, %p249
      %p252 = scmp.ne.s32.totalorder %s237, %s251
      %p253 = scmp.eq.s32.totalorder %s35, 0
      %p254 = por %p252, %p253
      %s256 = sadd.s32 %s255, 1
      %p259 = scmp.eq.s32.totalorder %s29, 1
      %p260 = scmp.ne.s32.totalorder %s255, %s257
      %p261 = scmp.eq.s32.totalorder %s29, 0
      %p262 = por %p260, %p261
      %p263 = scmp.ne.s32.totalorder %s255, %s257
      %p264 = scmp.eq.s32.totalorder %s34, 1
      %p265 = por %p263, %p264
      %p266 = scmp.ne.s32.totalorder %s257, %s258
      %p267 = scmp.eq.s32.totalorder %s34, 0
      %p268 = por %p266, %p267
      %p269 = scmp.ne.s32.totalorder %s257, %s258
      %p270 = scmp.eq.s32.totalorder %s35, 1
      %p271 = por %p269, %p270
      %p273 = scmp.ne.s32.totalorder %s258, %s272
      %p274 = scmp.eq.s32.totalorder %s35, 0
      %p275 = por %p273, %p274
      %s277 = sadd.s32 %s276, 1
      %p280 = scmp.eq.s32.totalorder %s29, 1
      %p281 = scmp.ne.s32.totalorder %s276, %s278
      %p282 = scmp.eq.s32.totalorder %s29, 0
      %p283 = por %p281, %p282
      %p284 = scmp.ne.s32.totalorder %s276, %s278
      %p285 = scmp.eq.s32.totalorder %s34, 1
      %p286 = por %p284, %p285
      %p287 = scmp.ne.s32.totalorder %s278, %s279
      %p288 = scmp.eq.s32.totalorder %s34, 0
      %p289 = por %p287, %p288
      %p290 = scmp.ne.s32.totalorder %s278, %s279
      %p291 = scmp.eq.s32.totalorder %s35, 1
      %p292 = por %p290, %p291
      %p294 = scmp.ne.s32.totalorder %s279, %s293
      %p295 = scmp.eq.s32.totalorder %s35, 0
      %p296 = por %p294, %p295
      %s297 = ssub.s32 %s36, %s48
      %s298 = ssub.s32 %s37, %s44
      %s299 = sor.u32 %s297, %s298
      %p300 = scmp.eq.s32.totalorder %s299, 0
      %s302 = sadd.s32 %s301, 1
      %s303 = scalar_select %p300, %s301, %s302
      %p306 = pneg %p300
      %p307 = scmp.eq.s32.totalorder %s29, 1
      %p308 = por %p306, %p307
      %p309 = scmp.ne.s32.totalorder %s301, %s304
      %p310 = scmp.eq.s32.totalorder %s29, 0
      %p311 = por %p309, %p310
      %p312 = scmp.ne.s32.totalorder %s301, %s304
      %p313 = scmp.eq.s32.totalorder %s34, 1
      %p314 = por %p312, %p313
      %p315 = scmp.ne.s32.totalorder %s304, %s305
      %p316 = scmp.eq.s32.totalorder %s34, 0
      %p317 = por %p315, %p316
      %p318 = scmp.ne.s32.totalorder %s304, %s305
      %p319 = scmp.eq.s32.totalorder %s35, 1
      %p320 = por %p318, %p319
      %p322 = scmp.ne.s32.totalorder %s305, %s321
      %p323 = scmp.eq.s32.totalorder %s35, 0
      %p324 = por %p322, %p323
      %p325 = scmp.le.s32.totalorder 1, %s29
      %p326 = scmp.lt.s32.totalorder %s29, 3
      %p327 = pnand %p325, %p326
      %p328 = pneg %p327
      // Predicated region
      $region9: #{mha_forward.1} parent=5 // pred_check
        _
      $region10: #{mha_forward.1} parent=5 // pred_check_branch
        %330 = sbr.rel (%p327) target = $region12
      $region11: #{mha_forward.1} parent=5 // pred_region
        %s331 = ssub.s32 %s29, 1
        // Predicated region
        $region13: #{mha_forward.1} parent=11 // pred_check
          %p332 = pneg %p142
        $region14: #{mha_forward.1} parent=11 // pred_check_branch
          %334 = sbr.rel (%p332) target = $region16
        $region15: #{mha_forward.1} parent=11 // pred_region
          _
        $region16: #{mha_forward.1} parent=11 // pred_fallthru
          _
        // Predicated region
        $region17: #{mha_forward.1} parent=11 // pred_check
          %p335 = pneg %p163
        $region18: #{mha_forward.1} parent=11 // pred_check_branch
          %337 = sbr.rel (%p335) target = $region20
        $region19: #{mha_forward.1} parent=11 // pred_region
          _
        $region20: #{mha_forward.1} parent=11 // pred_fallthru
          _
        // Predicated region
        $region21: #{mha_forward.1} parent=11 // pred_check
          %p338 = pneg %p184
        $region22: #{mha_forward.1} parent=11 // pred_check_branch
          %340 = sbr.rel (%p338) target = $region24
        $region23: #{mha_forward.1} parent=11 // pred_region
          %s342 = ssub.s32 512, 512
          %343 = vsyncadd [#allocation11], %s342
          %s344 = sshll.u32 [#allocation10], 4
          %s345 = int_to_ptr.vmem [resolvable:$true] %s344
          %350 = dma.hbm_to_vmem [thread:$0]  %s5, 512, %s345, [#allocation11], 128, 128, 8
        $region24: #{mha_forward.1} parent=11 // pred_fallthru
          _
        // Predicated region
        $region25: #{mha_forward.1} parent=11 // pred_check
          %p351 = pneg %p205
        $region26: #{mha_forward.1} parent=11 // pred_check_branch
          %353 = sbr.rel (%p351) target = $region28
        $region27: #{mha_forward.1} parent=11 // pred_region
          _
        $region28: #{mha_forward.1} parent=11 // pred_fallthru
          _
        // Predicated region
        $region29: #{mha_forward.1} parent=11 // pred_check
          %p354 = pneg %p226
        $region30: #{mha_forward.1} parent=11 // pred_check_branch
          %356 = sbr.rel (%p354) target = $region32
        $region31: #{mha_forward.1} parent=11 // pred_region
          %s358 = ssub.s32 512, 512
          %359 = vsyncadd [#allocation11], %s358
          %s360 = sshll.u32 [#allocation12], 4
          %s361 = int_to_ptr.vmem [resolvable:$true] %s360
          %366 = dma.hbm_to_vmem [thread:$0]  %s7, 512, %s361, [#allocation11], 128, 128, 8
        $region32: #{mha_forward.1} parent=11 // pred_fallthru
          _
        // Predicated region
        $region33: #{mha_forward.1} parent=11 // pred_check
          %p367 = pneg %p247
        $region34: #{mha_forward.1} parent=11 // pred_check_branch
          %369 = sbr.rel (%p367) target = $region36
        $region35: #{mha_forward.1} parent=11 // pred_region
          %s371 = ssub.s32 16, 16
          %372 = vsyncadd [#allocation14], %s371
          %s374 = sshll.u32 [#allocation13], 4
          %s375 = int_to_ptr.vmem [resolvable:$true] %s374
          %377 = dma.hbm_to_vmem [thread:$0]  %s8, 16, %s375, [#allocation14]
        $region36: #{mha_forward.1} parent=11 // pred_fallthru
          _
        // Predicated region
        $region37: #{mha_forward.1} parent=11 // pred_check
          %p378 = pneg %p268
        $region38: #{mha_forward.1} parent=11 // pred_check_branch
          %380 = sbr.rel (%p378) target = $region40
        $region39: #{mha_forward.1} parent=11 // pred_region
          %s382 = ssub.s32 512, 512
          %383 = vsyncadd [#allocation14], %s382
          %s384 = sshll.u32 [#allocation15], 4
          %s385 = int_to_ptr.vmem [resolvable:$true] %s384
          %390 = dma.hbm_to_vmem [thread:$0]  %s9, 512, %s385, [#allocation14], 128, 128, 8
        $region40: #{mha_forward.1} parent=11 // pred_fallthru
          _
        // Predicated region
        $region41: #{mha_forward.1} parent=11 // pred_check
          %p391 = pneg %p289
        $region42: #{mha_forward.1} parent=11 // pred_check_branch
          %393 = sbr.rel (%p391) target = $region44
        $region43: #{mha_forward.1} parent=11 // pred_region
          %s395 = ssub.s32 16, 16
          %396 = vsyncadd [#allocation17], %s395
          %s398 = sshll.u32 [#allocation16], 4
          %s399 = int_to_ptr.vmem [resolvable:$true] %s398
          %401 = dma.hbm_to_vmem [thread:$0]  %s10, 16, %s399, [#allocation17]
        $region44: #{mha_forward.1} parent=11 // pred_fallthru
          _
      $region12: #{mha_forward.1} parent=5 // pred_fallthru
        _
      %p402 = scmp.lt.s32.totalorder %s29, 2
      // Predicated region
      $region45: #{mha_forward.1} parent=5 // pred_check
        %p403 = pneg %p402
      $region46: #{mha_forward.1} parent=5 // pred_check_branch
        %405 = sbr.rel (%p403) target = $region48
      $region47: #{mha_forward.1} parent=5 // pred_region
        // Predicated region
        $region49: #{mha_forward.1} parent=47 // pred_check
          %p406 = pneg %p63
        $region50: #{mha_forward.1} parent=47 // pred_check_branch
          %408 = sbr.rel (%p406) target = $region52
        $region51: #{mha_forward.1} parent=47 // pred_region
          %s409 = sand.u32 %s53, 1
          %s410 = scalar_lea.sflag [#allocation5], %s409
          %s411 = sand.u32 %s53, 1
          %s412 = smul.addr %s411, 8
          %s413 = scalar_lea.vmem [#allocation4], %s412
          %s415 = ssub.s32 128, 128
          %416 = vsyncadd %s410, %s415
          %s417 = sadd.s32 %s37, %s36
          %s418 = smul.addr %s417, 128
          %s419 = scalar_lea.hbm %s0, %s418
          %s421 = sshll.u32 %s413, 4
          %s422 = int_to_ptr.vmem [resolvable:$true] %s421
          %424 = dma.hbm_to_vmem [thread:$0]  %s419, 128, %s422, %s410
        $region52: #{mha_forward.1} parent=47 // pred_fallthru
          _
        // Predicated region
        $region53: #{mha_forward.1} parent=47 // pred_check
          %p425 = pneg %p89
        $region54: #{mha_forward.1} parent=47 // pred_check_branch
          %427 = sbr.rel (%p425) target = $region56
        $region55: #{mha_forward.1} parent=47 // pred_region
          %s428 = sand.u32 %s29, 1
          %s429 = scalar_lea.sflag [#allocation8], %s428
          %s430 = sand.u32 %s79, 1
          %s431 = smul.addr %s430, 8
          %s432 = scalar_lea.vmem [#allocation7], %s431
          %s434 = ssub.s32 128, 128
          %435 = vsyncadd %s429, %s434
          %s436 = smul.addr %s36, 128
          %s437 = scalar_lea.hbm %s1, %s436
          %s439 = sshll.u32 %s432, 4
          %s440 = int_to_ptr.vmem [resolvable:$true] %s439
          %442 = dma.hbm_to_vmem [thread:$0]  %s437, 128, %s440, %s429
        $region56: #{mha_forward.1} parent=47 // pred_fallthru
          _
        // Predicated region
        $region57: #{mha_forward.1} parent=47 // pred_check
          %p443 = pneg %p115
        $region58: #{mha_forward.1} parent=47 // pred_check_branch
          %445 = sbr.rel (%p443) target = $region60
        $region59: #{mha_forward.1} parent=47 // pred_region
          %s446 = sand.u32 %s29, 1
          %s447 = scalar_lea.sflag [#allocation8], %s446
          %s448 = sand.u32 %s105, 1
          %s449 = smul.addr %s448, 8
          %s450 = scalar_lea.vmem [#allocation9], %s449
          %s452 = ssub.s32 128, 128
          %453 = vsyncadd %s447, %s452
          %s454 = smul.addr %s36, 128
          %s455 = scalar_lea.hbm %s2, %s454
          %s457 = sshll.u32 %s450, 4
          %s458 = int_to_ptr.vmem [resolvable:$true] %s457
          %460 = dma.hbm_to_vmem [thread:$0]  %s455, 128, %s458, %s447
        $region60: #{mha_forward.1} parent=47 // pred_fallthru
          _
      $region48: #{mha_forward.1} parent=5 // pred_fallthru
        _
      %p461 = scmp.le.s32.totalorder 1, %s29
      %p462 = scmp.lt.s32.totalorder %s29, 3
      %p463 = pnand %p461, %p462
      %p464 = pneg %p463
      // Predicated region
      $region61: #{mha_forward.1} parent=5 // pred_check
        _
      $region62: #{mha_forward.1} parent=5 // pred_check_branch
        %466 = sbr.rel (%p463) target = $region64
      $region63: #{mha_forward.1} parent=5 // pred_region
        %s467 = ssub.s32 %s29, 1
        %s468 = sand.u32 %s56, 1
        %s469 = scalar_lea.sflag [#allocation5], %s468
        %s470 = sand.u32 %s56, 1
        %s471 = smul.addr %s470, 8
        %s472 = scalar_lea.vmem [#allocation4], %s471
        // Predicated region
        $region65: #{mha_forward.1} parent=63 // pred_check
          %p473 = pneg %p69
        $region66: #{mha_forward.1} parent=63 // pred_check_branch
          %475 = sbr.rel (%p473) target = $region68
        $region67: #{mha_forward.1} parent=63 // pred_region
          %476 = dma.done %s469, 128
        $region68: #{mha_forward.1} parent=63 // pred_fallthru
          _
        %s477 = sand.u32 %s34, 1
        %s478 = scalar_lea.sflag [#allocation8], %s477
        %s479 = sand.u32 %s82, 1
        %s480 = smul.addr %s479, 8
        %s481 = scalar_lea.vmem [#allocation7], %s480
        // Predicated region
        $region69: #{mha_forward.1} parent=63 // pred_check
          %p482 = pneg %p95
        $region70: #{mha_forward.1} parent=63 // pred_check_branch
          %484 = sbr.rel (%p482) target = $region72
        $region71: #{mha_forward.1} parent=63 // pred_region
          %485 = dma.done %s478, 128
        $region72: #{mha_forward.1} parent=63 // pred_fallthru
          _
        %s486 = sand.u32 %s34, 1
        %s487 = scalar_lea.sflag [#allocation8], %s486
        %s488 = sand.u32 %s108, 1
        %s489 = smul.addr %s488, 8
        %s490 = scalar_lea.vmem [#allocation9], %s489
        // Predicated region
        $region73: #{mha_forward.1} parent=63 // pred_check
          %p491 = pneg %p121
        $region74: #{mha_forward.1} parent=63 // pred_check_branch
          %493 = sbr.rel (%p491) target = $region76
        $region75: #{mha_forward.1} parent=63 // pred_region
          %494 = dma.done %s487, 128
        $region76: #{mha_forward.1} parent=63 // pred_fallthru
          _
        // Predicated region
        $region77: #{mha_forward.1} parent=63 // pred_check
          %p495 = pneg %p184
        $region78: #{mha_forward.1} parent=63 // pred_check_branch
          %497 = sbr.rel (%p495) target = $region80
        $region79: #{mha_forward.1} parent=63 // pred_region
          %498 = dma.done [#allocation11], 512
        $region80: #{mha_forward.1} parent=63 // pred_fallthru
          _
        // Predicated region
        $region81: #{mha_forward.1} parent=63 // pred_check
          %p499 = pneg %p226
        $region82: #{mha_forward.1} parent=63 // pred_check_branch
          %501 = sbr.rel (%p499) target = $region84
        $region83: #{mha_forward.1} parent=63 // pred_region
          %502 = dma.done [#allocation11], 512
        $region84: #{mha_forward.1} parent=63 // pred_fallthru
          _
        // Predicated region
        $region85: #{mha_forward.1} parent=63 // pred_check
          %p503 = pneg %p247
        $region86: #{mha_forward.1} parent=63 // pred_check_branch
          %505 = sbr.rel (%p503) target = $region88
        $region87: #{mha_forward.1} parent=63 // pred_region
          %506 = dma.done [#allocation14], 16
        $region88: #{mha_forward.1} parent=63 // pred_fallthru
          _
        // Predicated region
        $region89: #{mha_forward.1} parent=63 // pred_check
          %p507 = pneg %p268
        $region90: #{mha_forward.1} parent=63 // pred_check_branch
          %509 = sbr.rel (%p507) target = $region92
        $region91: #{mha_forward.1} parent=63 // pred_region
          %510 = dma.done [#allocation14], 512
        $region92: #{mha_forward.1} parent=63 // pred_fallthru
          _
        // Predicated region
        $region93: #{mha_forward.1} parent=63 // pred_check
          %p511 = pneg %p289
        $region94: #{mha_forward.1} parent=63 // pred_check_branch
          %513 = sbr.rel (%p511) target = $region96
        $region95: #{mha_forward.1} parent=63 // pred_region
          %514 = dma.done [#allocation17], 16
        $region96: #{mha_forward.1} parent=63 // pred_fallthru
          _
        %s515 = sand.u32 %s56, 1
        %s516 = scalar_lea.sflag [#allocation5], %s515
        %s517 = sand.u32 %s56, 1
        %s518 = smul.addr %s517, 8
        %s519 = scalar_lea.vmem [#allocation4], %s518
        %p520 = pneg %p69
        %p521 = pneg %p66
        %s522 = sand.u32 %s34, 1
        %s523 = scalar_lea.sflag [#allocation8], %s522
        %s524 = sand.u32 %s82, 1
        %s525 = smul.addr %s524, 8
        %s526 = scalar_lea.vmem [#allocation7], %s525
        %p527 = pneg %p95
        %p528 = pneg %p92
        %s529 = sand.u32 %s34, 1
        %s530 = scalar_lea.sflag [#allocation8], %s529
        %s531 = sand.u32 %s108, 1
        %s532 = smul.addr %s531, 8
        %s533 = scalar_lea.vmem [#allocation9], %s532
        %p534 = pneg %p121
        %p535 = pneg %p118
        %p536 = pneg %p142
        %p537 = pneg %p139
        %p538 = pneg %p163
        %p539 = pneg %p160
        %p540 = pneg %p184
        %p541 = pneg %p181
        %p542 = pneg %p205
        %p543 = pneg %p202
        %p544 = pneg %p226
        %p545 = pneg %p223
        %p546 = pneg %p247
        %p547 = pneg %p244
        %p548 = pneg %p268
        %p549 = pneg %p265
        %p550 = pneg %p289
        %p551 = pneg %p286
        %p552 = pneg %p317
        %p553 = pneg %p314
        %s554 = sand.u32 %s304, 1
        %s555 = scalar_lea.sflag [#allocation6], %s554
        %s556 = sand.u32 %s304, 1
        %s557 = smul.addr %s556, 8
        %s558 = scalar_lea.vmem [#allocation18], %s557
        %p559 = scmp.eq.s32.totalorder %s39, 0
        // Predicated region
        $region97: #{mha_forward.1} parent=63 // pred_check
          %p560 = pneg %p559
        $region98: #{mha_forward.1} parent=63 // pred_check_branch
          %562 = sbr.rel (%p560) target = $region100
        $region99: #{mha_forward.1} parent=63 // pred_region
          %v563 = vld [vmem:[%s481] sm:$0xff]
          %v564 = vld [vmem:[#allocation10] sm:$0xff]
          %v565 = vld [vmem:[#allocation10 + $0x8] sm:$0xff]
          %v566 = vld [vmem:[#allocation10 + $0x10] sm:$0xff]
          %v567 = vld [vmem:[#allocation10 + $0x18] sm:$0xff]
          %v568 = vld [vmem:[%s6] sm:$0x1]
          %v570 = vlaneseq
          %v571 = vshrl.u32 %v570, 7
          %v572 = vsub.s32 0, %v571
          %v573 = vrot.slane %v568, %v572
          %vm575 = vcmask 261120
          %v577 = vsel %vm575, %v563, 0
          %579 = vmatprep.subr.mxu0 0.0
          %580 = vmatpush1.msra.mxu0 %v564
          %581 = vmatprep.subr.mxu0 0.0
          %582 = vmatpush1.msra.mxu0 %v565
          %583 = vmatprep.subr.mxu0 0.0
          %584 = vmatpush1.msra.mxu0 %v566
          %585 = vmatprep.subr.mxu0 0.0
          %586 = vmatpush1.msra.mxu0 %v567
          %587 = vmatprep.subr.mxu0 0.0
          %588 = vmatpush1.msra.mxu0 0.0
          %589 = vmatprep.subr.mxu0 0.0
          %590 = vmatpush1.msra.mxu0 0.0
          %591 = vmatprep.subr.mxu0 0.0
          %592 = vmatpush1.msra.mxu0 0.0
          %593 = vmatprep.subr.mxu0 0.0
          %594 = vmatpush1.msra.mxu0 0.0
          %595 = vmatprep.subr.mxu0 0.0
          %596 = vmatpush1.msra.mxu0 0.0
          %597 = vmatprep.subr.mxu0 0.0
          %598 = vmatpush1.msra.mxu0 0.0
          %599 = vmatprep.subr.mxu0 0.0
          %600 = vmatpush1.msra.mxu0 0.0
          %601 = vmatprep.subr.mxu0 0.0
          %602 = vmatpush1.msra.mxu0 0.0
          %603 = vmatprep.subr.mxu0 0.0
          %604 = vmatpush1.msra.mxu0 0.0
          %605 = vmatprep.subr.mxu0 0.0
          %606 = vmatpush1.msra.mxu0 0.0
          %607 = vmatprep.subr.mxu0 0.0
          %608 = vmatpush1.msra.mxu0 0.0
          %609 = vmatprep.subr.mxu0 0.0
          %610 = vmatpush1.msra.mxu0 0.0
          %611 = vmatprep.subr.mxu0 0.0
          %612 = vmatpush1.msra.mxu0 0.0
          %613 = vmatprep.subr.mxu0 0.0
          %614 = vmatpush1.msra.mxu0 0.0
          %615 = vmatprep.subr.mxu0 0.0
          %616 = vmatpush1.msra.mxu0 0.0
          %617 = vmatprep.subr.mxu0 0.0
          %618 = vmatpush1.msra.mxu0 0.0
          %619 = vmatprep.subr.mxu0 0.0
          %620 = vmatpush1.msra.mxu0 0.0
          %621 = vmatprep.subr.mxu0 0.0
          %622 = vmatpush1.msra.mxu0 0.0
          %623 = vmatprep.subr.mxu0 0.0
          %624 = vmatpush1.msra.mxu0 0.0
          %625 = vmatprep.subr.mxu0 0.0
          %626 = vmatpush1.msra.mxu0 0.0
          %627 = vmatprep.subr.mxu0 0.0
          %628 = vmatpush1.msra.mxu0 0.0
          %629 = vmatprep.subr.mxu0 0.0
          %630 = vmatpush1.msra.mxu0 0.0
          %631 = vmatprep.subr.mxu0 0.0
          %632 = vmatpush1.msra.mxu0 0.0
          %633 = vmatprep.subr.mxu0 0.0
          %634 = vmatpush1.msra.mxu0 0.0
          %635 = vmatprep.subr.mxu0 0.0
          %636 = vmatpush1.msra.mxu0 0.0
          %637 = vmatprep.subr.mxu0 0.0
          %638 = vmatpush1.msra.mxu0 0.0
          %639 = vmatprep.subr.mxu0 0.0
          %640 = vmatpush1.msra.mxu0 0.0
          %641 = vmatprep.subr.mxu0 0.0
          %642 = vmatpush1.msra.mxu0 0.0
          %643 = vmatprep.mubr.f32.mxu0 0.0
          %644 = vmatmul.mubr.f32.gmra.mrb[0].mxu0 %v577
          %v645 = vpop.f32.mrb[0].mxu0
          %v646 = vadd.f32 %v573, %v645
          %v647 = vpop.f32.mrb[0].mxu0
          %648 = vdwg.mxu0
          %v649 = vld [vmem:[%s490] sm:$0xff]
          %v650 = vld [vmem:[#allocation12] sm:$0xff]
          %v651 = vld [vmem:[#allocation12 + $0x8] sm:$0xff]
          %v652 = vld [vmem:[#allocation12 + $0x10] sm:$0xff]
          %v653 = vld [vmem:[#allocation12 + $0x18] sm:$0xff]
          %v654 = vld [vmem:[#allocation13] sm:$0x1]
          %v656 = vlaneseq
          %v657 = vshrl.u32 %v656, 7
          %v658 = vsub.s32 0, %v657
          %v659 = vrot.slane %v654, %v658
          %v662 = vsel %vm575, %v649, 0
          %664 = vmatprep.subr.mxu0 0.0
          %665 = vmatpush1.msra.mxu0 %v650
          %666 = vmatprep.subr.mxu0 0.0
          %667 = vmatpush1.msra.mxu0 %v651
          %668 = vmatprep.subr.mxu0 0.0
          %669 = vmatpush1.msra.mxu0 %v652
          %670 = vmatprep.subr.mxu0 0.0
          %671 = vmatpush1.msra.mxu0 %v653
          %672 = vmatprep.subr.mxu0 0.0
          %673 = vmatpush1.msra.mxu0 0.0
          %674 = vmatprep.subr.mxu0 0.0
          %675 = vmatpush1.msra.mxu0 0.0
          %676 = vmatprep.subr.mxu0 0.0
          %677 = vmatpush1.msra.mxu0 0.0
          %678 = vmatprep.subr.mxu0 0.0
          %679 = vmatpush1.msra.mxu0 0.0
          %680 = vmatprep.subr.mxu0 0.0
          %681 = vmatpush1.msra.mxu0 0.0
          %682 = vmatprep.subr.mxu0 0.0
          %683 = vmatpush1.msra.mxu0 0.0
          %684 = vmatprep.subr.mxu0 0.0
          %685 = vmatpush1.msra.mxu0 0.0
          %686 = vmatprep.subr.mxu0 0.0
          %687 = vmatpush1.msra.mxu0 0.0
          %688 = vmatprep.subr.mxu0 0.0
          %689 = vmatpush1.msra.mxu0 0.0
          %690 = vmatprep.subr.mxu0 0.0
          %691 = vmatpush1.msra.mxu0 0.0
          %692 = vmatprep.subr.mxu0 0.0
          %693 = vmatpush1.msra.mxu0 0.0
          %694 = vmatprep.subr.mxu0 0.0
          %695 = vmatpush1.msra.mxu0 0.0
          %696 = vmatprep.subr.mxu0 0.0
          %697 = vmatpush1.msra.mxu0 0.0
          %698 = vmatprep.subr.mxu0 0.0
          %699 = vmatpush1.msra.mxu0 0.0
          %700 = vmatprep.subr.mxu0 0.0
          %701 = vmatpush1.msra.mxu0 0.0
          %702 = vmatprep.subr.mxu0 0.0
          %703 = vmatpush1.msra.mxu0 0.0
          %704 = vmatprep.subr.mxu0 0.0
          %705 = vmatpush1.msra.mxu0 0.0
          %706 = vmatprep.subr.mxu0 0.0
          %707 = vmatpush1.msra.mxu0 0.0
          %708 = vmatprep.subr.mxu0 0.0
          %709 = vmatpush1.msra.mxu0 0.0
          %710 = vmatprep.subr.mxu0 0.0
          %711 = vmatpush1.msra.mxu0 0.0
          %712 = vmatprep.subr.mxu0 0.0
          %713 = vmatpush1.msra.mxu0 0.0
          %714 = vmatprep.subr.mxu0 0.0
          %715 = vmatpush1.msra.mxu0 0.0
          %716 = vmatprep.subr.mxu0 0.0
          %717 = vmatpush1.msra.mxu0 0.0
          %718 = vmatprep.subr.mxu0 0.0
          %719 = vmatpush1.msra.mxu0 0.0
          %720 = vmatprep.subr.mxu0 0.0
          %721 = vmatpush1.msra.mxu0 0.0
          %722 = vmatprep.subr.mxu0 0.0
          %723 = vmatpush1.msra.mxu0 0.0
          %724 = vmatprep.subr.mxu0 0.0
          %725 = vmatpush1.msra.mxu0 0.0
          %726 = vmatprep.subr.mxu0 0.0
          %727 = vmatpush1.msra.mxu0 0.0
          %728 = vmatprep.mubr.f32.mxu0 0.0
          %729 = vmatmul.mubr.f32.gmra.mrb[0].mxu0 %v662
          %v730 = vpop.f32.mrb[0].mxu0
          %v731 = vadd.f32 %v659, %v730
          %v732 = vpop.f32.mrb[0].mxu0
          %733 = vdwg.mxu0
          %734 = vxpose.xlu0.b32.start [1/16] %v646, 128
          %735 = vxpose.xlu0.b32.cont [2/16] 0.0, 128
          %736 = vxpose.xlu0.b32.cont [3/16] 0.0, 128
          %737 = vxpose.xlu0.b32.cont [4/16] 0.0, 128
          %738 = vxpose.xlu0.b32.cont [5/16] 0.0, 128
          %739 = vxpose.xlu0.b32.cont [6/16] 0.0, 128
          %740 = vxpose.xlu0.b32.cont [7/16] 0.0, 128
          %741 = vxpose.xlu0.b32.cont [8/16] 0.0, 128
          %742 = vxpose.xlu0.b32.cont [9/16] 0.0, 128
          %743 = vxpose.xlu0.b32.cont [10/16] 0.0, 128
          %744 = vxpose.xlu0.b32.cont [11/16] 0.0, 128
          %745 = vxpose.xlu0.b32.cont [12/16] 0.0, 128
          %746 = vxpose.xlu0.b32.cont [13/16] 0.0, 128
          %747 = vxpose.xlu0.b32.cont [14/16] 0.0, 128
          %748 = vxpose.xlu0.b32.cont [15/16] 0.0, 128
          %749 = vxpose.xlu0.b32.end [16/16] 0.0, 128
          %v750 = vpop.trf.xlu0
          %v751 = vpop.trf.xlu0
          %v752 = vpop.trf.xlu0
          %v753 = vpop.trf.xlu0
          %v754 = vpop.trf.xlu0
          %v755 = vpop.trf.xlu0
          %v756 = vpop.trf.xlu0
          %v757 = vpop.trf.xlu0
          %v758 = vpop.trf.xlu0
          %v759 = vpop.trf.xlu0
          %v760 = vpop.trf.xlu0
          %v761 = vpop.trf.xlu0
          %v762 = vpop.trf.xlu0
          %v763 = vpop.trf.xlu0
          %v764 = vpop.trf.xlu0
          %v765 = vpop.trf.xlu0
          %vm766 = vcmask 64512
          %767 = vst.msk [vmem:[#allocation2] sm:$0xff] %vm766, %v750
          %768 = vst.msk [vmem:[#allocation3] sm:$0xff] %vm766, %v731
          %770 = vrot.lane.b32.xlu0 %v646, 120
          %v771 = vpop.permute.xlu0 %770
          %773 = vxpose.xlu0.b32.start [1/16] %v771, 128
          %774 = vxpose.xlu0.b32.cont [2/16] 0.0, 128
          %775 = vxpose.xlu0.b32.cont [3/16] 0.0, 128
          %776 = vxpose.xlu0.b32.cont [4/16] 0.0, 128
          %777 = vxpose.xlu0.b32.cont [5/16] 0.0, 128
          %778 = vxpose.xlu0.b32.cont [6/16] 0.0, 128
          %779 = vxpose.xlu0.b32.cont [7/16] 0.0, 128
          %780 = vxpose.xlu0.b32.cont [8/16] 0.0, 128
          %781 = vxpose.xlu0.b32.cont [9/16] 0.0, 128
          %782 = vxpose.xlu0.b32.cont [10/16] 0.0, 128
          %783 = vxpose.xlu0.b32.cont [11/16] 0.0, 128
          %784 = vxpose.xlu0.b32.cont [12/16] 0.0, 128
          %785 = vxpose.xlu0.b32.cont [13/16] 0.0, 128
          %786 = vxpose.xlu0.b32.cont [14/16] 0.0, 128
          %787 = vxpose.xlu0.b32.cont [15/16] 0.0, 128
          %788 = vxpose.xlu0.b32.end [16/16] 0.0, 128
          %v789 = vpop.trf.xlu0
          %v790 = vpop.trf.xlu0
          %v791 = vpop.trf.xlu0
          %v792 = vpop.trf.xlu0
          %v793 = vpop.trf.xlu0
          %v794 = vpop.trf.xlu0
          %v795 = vpop.trf.xlu0
          %v796 = vpop.trf.xlu0
          %v797 = vpop.trf.xlu0
          %v798 = vpop.trf.xlu0
          %v799 = vpop.trf.xlu0
          %v800 = vpop.trf.xlu0
          %v801 = vpop.trf.xlu0
          %v802 = vpop.trf.xlu0
          %v803 = vpop.trf.xlu0
          %v804 = vpop.trf.xlu0
          %s805 = scalar_lea.vmem [#allocation2], 8
          %806 = vst.msk [vmem:[%s805] sm:$0xff] %vm766, %v789
          %808 = vrot.lane.b32.xlu0 %v731, 120
          %v809 = vpop.permute.xlu0 %808
          %s811 = scalar_lea.vmem [#allocation3], 8
          %812 = vst.msk [vmem:[%s811] sm:$0xff] %vm766, %v809
          %813 = vrot.lane.b32.xlu0 %v646, 112
          %v814 = vpop.permute.xlu0 %813
          %816 = vxpose.xlu0.b32.start [1/16] %v814, 128
          %817 = vxpose.xlu0.b32.cont [2/16] 0.0, 128
          %818 = vxpose.xlu0.b32.cont [3/16] 0.0, 128
          %819 = vxpose.xlu0.b32.cont [4/16] 0.0, 128
          %820 = vxpose.xlu0.b32.cont [5/16] 0.0, 128
          %821 = vxpose.xlu0.b32.cont [6/16] 0.0, 128
          %822 = vxpose.xlu0.b32.cont [7/16] 0.0, 128
          %823 = vxpose.xlu0.b32.cont [8/16] 0.0, 128
          %824 = vxpose.xlu0.b32.cont [9/16] 0.0, 128
          %825 = vxpose.xlu0.b32.cont [10/16] 0.0, 128
          %826 = vxpose.xlu0.b32.cont [11/16] 0.0, 128
          %827 = vxpose.xlu0.b32.cont [12/16] 0.0, 128
          %828 = vxpose.xlu0.b32.cont [13/16] 0.0, 128
          %829 = vxpose.xlu0.b32.cont [14/16] 0.0, 128
          %830 = vxpose.xlu0.b32.cont [15/16] 0.0, 128
          %831 = vxpose.xlu0.b32.end [16/16] 0.0, 128
          %v832 = vpop.trf.xlu0
          %v833 = vpop.trf.xlu0
          %v834 = vpop.trf.xlu0
          %v835 = vpop.trf.xlu0
          %v836 = vpop.trf.xlu0
          %v837 = vpop.trf.xlu0
          %v838 = vpop.trf.xlu0
          %v839 = vpop.trf.xlu0
          %v840 = vpop.trf.xlu0
          %v841 = vpop.trf.xlu0
          %v842 = vpop.trf.xlu0
          %v843 = vpop.trf.xlu0
          %v844 = vpop.trf.xlu0
          %v845 = vpop.trf.xlu0
          %v846 = vpop.trf.xlu0
          %v847 = vpop.trf.xlu0
          %s848 = scalar_lea.vmem [#allocation2], 16
          %849 = vst.msk [vmem:[%s848] sm:$0xff] %vm766, %v832
          %850 = vrot.lane.b32.xlu0 %v731, 112
          %v851 = vpop.permute.xlu0 %850
          %s853 = scalar_lea.vmem [#allocation3], 16
          %854 = vst.msk [vmem:[%s853] sm:$0xff] %vm766, %v851
          %855 = vrot.lane.b32.xlu0 %v646, 104
          %v856 = vpop.permute.xlu0 %855
          %858 = vxpose.xlu0.b32.start [1/16] %v856, 128
          %859 = vxpose.xlu0.b32.cont [2/16] 0.0, 128
          %860 = vxpose.xlu0.b32.cont [3/16] 0.0, 128
          %861 = vxpose.xlu0.b32.cont [4/16] 0.0, 128
          %862 = vxpose.xlu0.b32.cont [5/16] 0.0, 128
          %863 = vxpose.xlu0.b32.cont [6/16] 0.0, 128
          %864 = vxpose.xlu0.b32.cont [7/16] 0.0, 128
          %865 = vxpose.xlu0.b32.cont [8/16] 0.0, 128
          %866 = vxpose.xlu0.b32.cont [9/16] 0.0, 128
          %867 = vxpose.xlu0.b32.cont [10/16] 0.0, 128
          %868 = vxpose.xlu0.b32.cont [11/16] 0.0, 128
          %869 = vxpose.xlu0.b32.cont [12/16] 0.0, 128
          %870 = vxpose.xlu0.b32.cont [13/16] 0.0, 128
          %871 = vxpose.xlu0.b32.cont [14/16] 0.0, 128
          %872 = vxpose.xlu0.b32.cont [15/16] 0.0, 128
          %873 = vxpose.xlu0.b32.end [16/16] 0.0, 128
          %v874 = vpop.trf.xlu0
          %v875 = vpop.trf.xlu0
          %v876 = vpop.trf.xlu0
          %v877 = vpop.trf.xlu0
          %v878 = vpop.trf.xlu0
          %v879 = vpop.trf.xlu0
          %v880 = vpop.trf.xlu0
          %v881 = vpop.trf.xlu0
          %v882 = vpop.trf.xlu0
          %v883 = vpop.trf.xlu0
          %v884 = vpop.trf.xlu0
          %v885 = vpop.trf.xlu0
          %v886 = vpop.trf.xlu0
          %v887 = vpop.trf.xlu0
          %v888 = vpop.trf.xlu0
          %v889 = vpop.trf.xlu0
          %s890 = scalar_lea.vmem [#allocation2], 24
          %891 = vst.msk [vmem:[%s890] sm:$0xff] %vm766, %v874
          %892 = vrot.lane.b32.xlu0 %v731, 104
          %v893 = vpop.permute.xlu0 %892
          %s895 = scalar_lea.vmem [#allocation3], 24
          %896 = vst.msk [vmem:[%s895] sm:$0xff] %vm766, %v893
        $region100: #{mha_forward.1} parent=63 // pred_fallthru
          _
        %v897 = vld [vmem:[%s472] sm:$0xff]
        %v898 = vld [vmem:[%s3] sm:$0xff]
        %v899 = vld [vmem:[%s3 + $0x8] sm:$0xff]
        %v900 = vld [vmem:[%s3 + $0x10] sm:$0xff]
        %v901 = vld [vmem:[%s3 + $0x18] sm:$0xff]
        %v902 = vld [vmem:[%s4] sm:$0x1]
        %v904 = vlaneseq
        %v905 = vshrl.u32 %v904, 7
        %v906 = vsub.s32 0, %v905
        %v907 = vrot.slane %v902, %v906
        %vm909 = vcmask 261120
        %v911 = vsel %vm909, %v897, 0
        %913 = vmatprep.subr.mxu0 0.0
        %914 = vmatpush1.msra.mxu0 %v898
        %915 = vmatprep.subr.mxu0 0.0
        %916 = vmatpush1.msra.mxu0 %v899
        %917 = vmatprep.subr.mxu0 0.0
        %918 = vmatpush1.msra.mxu0 %v900
        %919 = vmatprep.subr.mxu0 0.0
        %920 = vmatpush1.msra.mxu0 %v901
        %921 = vmatprep.subr.mxu0 0.0
        %922 = vmatpush1.msra.mxu0 0.0
        %923 = vmatprep.subr.mxu0 0.0
        %924 = vmatpush1.msra.mxu0 0.0
        %925 = vmatprep.subr.mxu0 0.0
        %926 = vmatpush1.msra.mxu0 0.0
        %927 = vmatprep.subr.mxu0 0.0
        %928 = vmatpush1.msra.mxu0 0.0
        %929 = vmatprep.subr.mxu0 0.0
        %930 = vmatpush1.msra.mxu0 0.0
        %931 = vmatprep.subr.mxu0 0.0
        %932 = vmatpush1.msra.mxu0 0.0
        %933 = vmatprep.subr.mxu0 0.0
        %934 = vmatpush1.msra.mxu0 0.0
        %935 = vmatprep.subr.mxu0 0.0
        %936 = vmatpush1.msra.mxu0 0.0
        %937 = vmatprep.subr.mxu0 0.0
        %938 = vmatpush1.msra.mxu0 0.0
        %939 = vmatprep.subr.mxu0 0.0
        %940 = vmatpush1.msra.mxu0 0.0
        %941 = vmatprep.subr.mxu0 0.0
        %942 = vmatpush1.msra.mxu0 0.0
        %943 = vmatprep.subr.mxu0 0.0
        %944 = vmatpush1.msra.mxu0 0.0
        %945 = vmatprep.subr.mxu0 0.0
        %946 = vmatpush1.msra.mxu0 0.0
        %947 = vmatprep.subr.mxu0 0.0
        %948 = vmatpush1.msra.mxu0 0.0
        %949 = vmatprep.subr.mxu0 0.0
        %950 = vmatpush1.msra.mxu0 0.0
        %951 = vmatprep.subr.mxu0 0.0
        %952 = vmatpush1.msra.mxu0 0.0
        %953 = vmatprep.subr.mxu0 0.0
        %954 = vmatpush1.msra.mxu0 0.0
        %955 = vmatprep.subr.mxu0 0.0
        %956 = vmatpush1.msra.mxu0 0.0
        %957 = vmatprep.subr.mxu0 0.0
        %958 = vmatpush1.msra.mxu0 0.0
        %959 = vmatprep.subr.mxu0 0.0
        %960 = vmatpush1.msra.mxu0 0.0
        %961 = vmatprep.subr.mxu0 0.0
        %962 = vmatpush1.msra.mxu0 0.0
        %963 = vmatprep.subr.mxu0 0.0
        %964 = vmatpush1.msra.mxu0 0.0
        %965 = vmatprep.subr.mxu0 0.0
        %966 = vmatpush1.msra.mxu0 0.0
        %967 = vmatprep.subr.mxu0 0.0
        %968 = vmatpush1.msra.mxu0 0.0
        %969 = vmatprep.subr.mxu0 0.0
        %970 = vmatpush1.msra.mxu0 0.0
        %971 = vmatprep.subr.mxu0 0.0
        %972 = vmatpush1.msra.mxu0 0.0
        %973 = vmatprep.subr.mxu0 0.0
        %974 = vmatpush1.msra.mxu0 0.0
        %975 = vmatprep.subr.mxu0 0.0
        %976 = vmatpush1.msra.mxu0 0.0
        %977 = vmatprep.mubr.f32.mxu0 0.0
        %978 = vmatmul.mubr.f32.gmra.mrb[0].mxu0 %v911
        %v979 = vpop.f32.mrb[0].mxu0
        %v980 = vadd.f32 %v907, %v979
        %v981 = vpop.f32.mrb[0].mxu0
        %982 = vdwg.mxu0
        %v983 = vmul.f32 %v980, 0.17677669
        %v984 = vld [vmem:[#allocation16] sm:$0x1]
        %v986 = vlaneseq
        %v987 = vshrl.u32 %v986, 7
        %v988 = vsub.s32 0, %v987
        %v989 = vrot.slane %v984, %v988
        %v991 = vadd.f32 %v989, 0.0
        %v992 = vld [vmem:[#allocation2] sm:$0xff]
        %vm993 = vcmask 64512
        %v995 = vsel %vm993, %v983, 0
        %997 = vmatprep.subr.mxu0 0.0
        %998 = vmatpush1.msra.mxu0 %v992
        %999 = vmatprep.subr.mxu0 0.0
        %1000 = vmatpush1.msra.mxu0 0.0
        %1001 = vmatprep.subr.mxu0 0.0
        %1002 = vmatpush1.msra.mxu0 0.0
        %1003 = vmatprep.subr.mxu0 0.0
        %1004 = vmatpush1.msra.mxu0 0.0
        %1005 = vmatprep.subr.mxu0 0.0
        %1006 = vmatpush1.msra.mxu0 0.0
        %1007 = vmatprep.subr.mxu0 0.0
        %1008 = vmatpush1.msra.mxu0 0.0
        %1009 = vmatprep.subr.mxu0 0.0
        %1010 = vmatpush1.msra.mxu0 0.0
        %1011 = vmatprep.subr.mxu0 0.0
        %1012 = vmatpush1.msra.mxu0 0.0
        %1013 = vmatprep.subr.mxu0 0.0
        %1014 = vmatpush1.msra.mxu0 0.0
        %1015 = vmatprep.subr.mxu0 0.0
        %1016 = vmatpush1.msra.mxu0 0.0
        %1017 = vmatprep.subr.mxu0 0.0
        %1018 = vmatpush1.msra.mxu0 0.0
        %1019 = vmatprep.subr.mxu0 0.0
        %1020 = vmatpush1.msra.mxu0 0.0
        %1021 = vmatprep.subr.mxu0 0.0
        %1022 = vmatpush1.msra.mxu0 0.0
        %1023 = vmatprep.subr.mxu0 0.0
        %1024 = vmatpush1.msra.mxu0 0.0
        %1025 = vmatprep.subr.mxu0 0.0
        %1026 = vmatpush1.msra.mxu0 0.0
        %1027 = vmatprep.subr.mxu0 0.0
        %1028 = vmatpush1.msra.mxu0 0.0
        %1029 = vmatprep.subr.mxu0 0.0
        %1030 = vmatpush1.msra.mxu0 0.0
        %1031 = vmatprep.subr.mxu0 0.0
        %1032 = vmatpush1.msra.mxu0 0.0
        %1033 = vmatprep.subr.mxu0 0.0
        %1034 = vmatpush1.msra.mxu0 0.0
        %1035 = vmatprep.subr.mxu0 0.0
        %1036 = vmatpush1.msra.mxu0 0.0
        %1037 = vmatprep.subr.mxu0 0.0
        %1038 = vmatpush1.msra.mxu0 0.0
        %1039 = vmatprep.subr.mxu0 0.0
        %1040 = vmatpush1.msra.mxu0 0.0
        %1041 = vmatprep.subr.mxu0 0.0
        %1042 = vmatpush1.msra.mxu0 0.0
        %1043 = vmatprep.subr.mxu0 0.0
        %1044 = vmatpush1.msra.mxu0 0.0
        %1045 = vmatprep.subr.mxu0 0.0
        %1046 = vmatpush1.msra.mxu0 0.0
        %1047 = vmatprep.subr.mxu0 0.0
        %1048 = vmatpush1.msra.mxu0 0.0
        %1049 = vmatprep.subr.mxu0 0.0
        %1050 = vmatpush1.msra.mxu0 0.0
        %1051 = vmatprep.subr.mxu0 0.0
        %1052 = vmatpush1.msra.mxu0 0.0
        %1053 = vmatprep.subr.mxu0 0.0
        %1054 = vmatpush1.msra.mxu0 0.0
        %1055 = vmatprep.subr.mxu0 0.0
        %1056 = vmatpush1.msra.mxu0 0.0
        %1057 = vmatprep.subr.mxu0 0.0
        %1058 = vmatpush1.msra.mxu0 0.0
        %1059 = vmatprep.subr.mxu0 0.0
        %1060 = vmatpush1.msra.mxu0 0.0
        %1061 = vmatprep.mubr.f32.mxu0 0.0
        %1062 = vmatmul.mubr.f32.gmra.mrb[0].mxu0 %v995
        %v1063 = vpop.f32.mrb[0].mxu0
        %v1064 = vadd.f32 0.0, %v1063
        %v1065 = vpop.f32.mrb[0].mxu0
        %1066 = vdwg.mxu0
        %v1067 = vsel %vm993, %v1064, -inf
        %1068 = vmax.xlane.f32.xlu0 %v1067
        %v1069 = vpop.xlane.xlu0 %1068
        %v1070 = vsub.f32 %v1064, %v1069
        %v1071 = vmul.f32 %v1070, 1.442695
        %v1072 = vpow.pop %v1071
        %v1073 = vsel %vm993, %v1072, 0.0
        %1074 = vadd.xlane.f32.xlu0 %v1073
        %v1075 = vpop.xlane.xlu0 %1074
        %v1076 = vrcp.pop %v1075
        %v1077 = vmul.f32 %v1072, %v1076
        %v1078 = vld [vmem:[#allocation3] sm:$0xff]
        %v1080 = vsel %vm993, %v1077, 0
        %1082 = vmatprep.subr.mxu0 0.0
        %1083 = vmatpush1.msra.mxu0 %v1078
        %1084 = vmatprep.subr.mxu0 0.0
        %1085 = vmatpush1.msra.mxu0 0.0
        %1086 = vmatprep.subr.mxu0 0.0
        %1087 = vmatpush1.msra.mxu0 0.0
        %1088 = vmatprep.subr.mxu0 0.0
        %1089 = vmatpush1.msra.mxu0 0.0
        %1090 = vmatprep.subr.mxu0 0.0
        %1091 = vmatpush1.msra.mxu0 0.0
        %1092 = vmatprep.subr.mxu0 0.0
        %1093 = vmatpush1.msra.mxu0 0.0
        %1094 = vmatprep.subr.mxu0 0.0
        %1095 = vmatpush1.msra.mxu0 0.0
        %1096 = vmatprep.subr.mxu0 0.0
        %1097 = vmatpush1.msra.mxu0 0.0
        %1098 = vmatprep.subr.mxu0 0.0
        %1099 = vmatpush1.msra.mxu0 0.0
        %1100 = vmatprep.subr.mxu0 0.0
        %1101 = vmatpush1.msra.mxu0 0.0
        %1102 = vmatprep.subr.mxu0 0.0
        %1103 = vmatpush1.msra.mxu0 0.0
        %1104 = vmatprep.subr.mxu0 0.0
        %1105 = vmatpush1.msra.mxu0 0.0
        %1106 = vmatprep.subr.mxu0 0.0
        %1107 = vmatpush1.msra.mxu0 0.0
        %1108 = vmatprep.subr.mxu0 0.0
        %1109 = vmatpush1.msra.mxu0 0.0
        %1110 = vmatprep.subr.mxu0 0.0
        %1111 = vmatpush1.msra.mxu0 0.0
        %1112 = vmatprep.subr.mxu0 0.0
        %1113 = vmatpush1.msra.mxu0 0.0
        %1114 = vmatprep.subr.mxu0 0.0
        %1115 = vmatpush1.msra.mxu0 0.0
        %1116 = vmatprep.subr.mxu0 0.0
        %1117 = vmatpush1.msra.mxu0 0.0
        %1118 = vmatprep.subr.mxu0 0.0
        %1119 = vmatpush1.msra.mxu0 0.0
        %1120 = vmatprep.subr.mxu0 0.0
        %1121 = vmatpush1.msra.mxu0 0.0
        %1122 = vmatprep.subr.mxu0 0.0
        %1123 = vmatpush1.msra.mxu0 0.0
        %1124 = vmatprep.subr.mxu0 0.0
        %1125 = vmatpush1.msra.mxu0 0.0
        %1126 = vmatprep.subr.mxu0 0.0
        %1127 = vmatpush1.msra.mxu0 0.0
        %1128 = vmatprep.subr.mxu0 0.0
        %1129 = vmatpush1.msra.mxu0 0.0
        %1130 = vmatprep.subr.mxu0 0.0
        %1131 = vmatpush1.msra.mxu0 0.0
        %1132 = vmatprep.subr.mxu0 0.0
        %1133 = vmatpush1.msra.mxu0 0.0
        %1134 = vmatprep.subr.mxu0 0.0
        %1135 = vmatpush1.msra.mxu0 0.0
        %1136 = vmatprep.subr.mxu0 0.0
        %1137 = vmatpush1.msra.mxu0 0.0
        %1138 = vmatprep.subr.mxu0 0.0
        %1139 = vmatpush1.msra.mxu0 0.0
        %1140 = vmatprep.subr.mxu0 0.0
        %1141 = vmatpush1.msra.mxu0 0.0
        %1142 = vmatprep.subr.mxu0 0.0
        %1143 = vmatpush1.msra.mxu0 0.0
        %1144 = vmatprep.subr.mxu0 0.0
        %1145 = vmatpush1.msra.mxu0 0.0
        %1146 = vmatprep.mubr.f32.mxu0 0.0
        %1147 = vmatmul.mubr.f32.gmra.mrb[0].mxu0 %v1080
        %v1148 = vpop.f32.mrb[0].mxu0
        %v1149 = vadd.f32 0.0, %v1148
        %v1150 = vpop.f32.mrb[0].mxu0
        %1151 = vdwg.mxu0
        %v1152 = vld [vmem:[#allocation15] sm:$0xff]
        %v1154 = vsel %vm993, %v1149, 0
        %1156 = vmatprep.subr.mxu0 0.0
        %1157 = vmatpush1.msra.mxu0 %v1152
        %1158 = vmatprep.subr.mxu0 0.0
        %1159 = vmatpush1.msra.mxu0 0.0
        %1160 = vmatprep.subr.mxu0 0.0
        %1161 = vmatpush1.msra.mxu0 0.0
        %1162 = vmatprep.subr.mxu0 0.0
        %1163 = vmatpush1.msra.mxu0 0.0
        %1164 = vmatprep.subr.mxu0 0.0
        %1165 = vmatpush1.msra.mxu0 0.0
        %1166 = vmatprep.subr.mxu0 0.0
        %1167 = vmatpush1.msra.mxu0 0.0
        %1168 = vmatprep.subr.mxu0 0.0
        %1169 = vmatpush1.msra.mxu0 0.0
        %1170 = vmatprep.subr.mxu0 0.0
        %1171 = vmatpush1.msra.mxu0 0.0
        %1172 = vmatprep.subr.mxu0 0.0
        %1173 = vmatpush1.msra.mxu0 0.0
        %1174 = vmatprep.subr.mxu0 0.0
        %1175 = vmatpush1.msra.mxu0 0.0
        %1176 = vmatprep.subr.mxu0 0.0
        %1177 = vmatpush1.msra.mxu0 0.0
        %1178 = vmatprep.subr.mxu0 0.0
        %1179 = vmatpush1.msra.mxu0 0.0
        %1180 = vmatprep.subr.mxu0 0.0
        %1181 = vmatpush1.msra.mxu0 0.0
        %1182 = vmatprep.subr.mxu0 0.0
        %1183 = vmatpush1.msra.mxu0 0.0
        %1184 = vmatprep.subr.mxu0 0.0
        %1185 = vmatpush1.msra.mxu0 0.0
        %1186 = vmatprep.subr.mxu0 0.0
        %1187 = vmatpush1.msra.mxu0 0.0
        %1188 = vmatprep.subr.mxu0 0.0
        %1189 = vmatpush1.msra.mxu0 0.0
        %1190 = vmatprep.subr.mxu0 0.0
        %1191 = vmatpush1.msra.mxu0 0.0
        %1192 = vmatprep.subr.mxu0 0.0
        %1193 = vmatpush1.msra.mxu0 0.0
        %1194 = vmatprep.subr.mxu0 0.0
        %1195 = vmatpush1.msra.mxu0 0.0
        %1196 = vmatprep.subr.mxu0 0.0
        %1197 = vmatpush1.msra.mxu0 0.0
        %1198 = vmatprep.subr.mxu0 0.0
        %1199 = vmatpush1.msra.mxu0 0.0
        %1200 = vmatprep.subr.mxu0 0.0
        %1201 = vmatpush1.msra.mxu0 0.0
        %1202 = vmatprep.subr.mxu0 0.0
        %1203 = vmatpush1.msra.mxu0 0.0
        %1204 = vmatprep.subr.mxu0 0.0
        %1205 = vmatpush1.msra.mxu0 0.0
        %1206 = vmatprep.subr.mxu0 0.0
        %1207 = vmatpush1.msra.mxu0 0.0
        %1208 = vmatprep.subr.mxu0 0.0
        %1209 = vmatpush1.msra.mxu0 0.0
        %1210 = vmatprep.subr.mxu0 0.0
        %1211 = vmatpush1.msra.mxu0 0.0
        %1212 = vmatprep.subr.mxu0 0.0
        %1213 = vmatpush1.msra.mxu0 0.0
        %1214 = vmatprep.subr.mxu0 0.0
        %1215 = vmatpush1.msra.mxu0 0.0
        %1216 = vmatprep.subr.mxu0 0.0
        %1217 = vmatpush1.msra.mxu0 0.0
        %1218 = vmatprep.subr.mxu0 0.0
        %1219 = vmatpush1.msra.mxu0 0.0
        %1220 = vmatprep.mubr.f32.mxu0 0.0
        %1221 = vmatmul.mubr.f32.gmra.mrb[0].mxu0 %v1154
        %v1222 = vpop.f32.mrb[0].mxu0
        %v1223 = vadd.f32 0.0, %v1222
        %v1224 = vpop.f32.mrb[0].mxu0
        %1225 = vdwg.mxu0
        %v1226 = vadd.f32 %v991, %v1223
        %s1227 = scalar_lea.vmem [#allocation2], 8
        %v1228 = vld [vmem:[%s1227] sm:$0xff]
        %1229 = vrot.lane.b32.xlu0 %v983, 120
        %v1230 = vpop.permute.xlu0 %1229
        %v1231 = vsel %vm993, %v1230, 0
        %1233 = vmatprep.subr.mxu0 0.0
        %1234 = vmatpush1.msra.mxu0 %v1228
        %1235 = vmatprep.subr.mxu0 0.0
        %1236 = vmatpush1.msra.mxu0 0.0
        %1237 = vmatprep.subr.mxu0 0.0
        %1238 = vmatpush1.msra.mxu0 0.0
        %1239 = vmatprep.subr.mxu0 0.0
        %1240 = vmatpush1.msra.mxu0 0.0
        %1241 = vmatprep.subr.mxu0 0.0
        %1242 = vmatpush1.msra.mxu0 0.0
        %1243 = vmatprep.subr.mxu0 0.0
        %1244 = vmatpush1.msra.mxu0 0.0
        %1245 = vmatprep.subr.mxu0 0.0
        %1246 = vmatpush1.msra.mxu0 0.0
        %1247 = vmatprep.subr.mxu0 0.0
        %1248 = vmatpush1.msra.mxu0 0.0
        %1249 = vmatprep.subr.mxu0 0.0
        %1250 = vmatpush1.msra.mxu0 0.0
        %1251 = vmatprep.subr.mxu0 0.0
        %1252 = vmatpush1.msra.mxu0 0.0
        %1253 = vmatprep.subr.mxu0 0.0
        %1254 = vmatpush1.msra.mxu0 0.0
        %1255 = vmatprep.subr.mxu0 0.0
        %1256 = vmatpush1.msra.mxu0 0.0
        %1257 = vmatprep.subr.mxu0 0.0
        %1258 = vmatpush1.msra.mxu0 0.0
        %1259 = vmatprep.subr.mxu0 0.0
        %1260 = vmatpush1.msra.mxu0 0.0
        %1261 = vmatprep.subr.mxu0 0.0
        %1262 = vmatpush1.msra.mxu0 0.0
        %1263 = vmatprep.subr.mxu0 0.0
        %1264 = vmatpush1.msra.mxu0 0.0
        %1265 = vmatprep.subr.mxu0 0.0
        %1266 = vmatpush1.msra.mxu0 0.0
        %1267 = vmatprep.subr.mxu0 0.0
        %1268 = vmatpush1.msra.mxu0 0.0
        %1269 = vmatprep.subr.mxu0 0.0
        %1270 = vmatpush1.msra.mxu0 0.0
        %1271 = vmatprep.subr.mxu0 0.0
        %1272 = vmatpush1.msra.mxu0 0.0
        %1273 = vmatprep.subr.mxu0 0.0
        %1274 = vmatpush1.msra.mxu0 0.0
        %1275 = vmatprep.subr.mxu0 0.0
        %1276 = vmatpush1.msra.mxu0 0.0
        %1277 = vmatprep.subr.mxu0 0.0
        %1278 = vmatpush1.msra.mxu0 0.0
        %1279 = vmatprep.subr.mxu0 0.0
        %1280 = vmatpush1.msra.mxu0 0.0
        %1281 = vmatprep.subr.mxu0 0.0
        %1282 = vmatpush1.msra.mxu0 0.0
        %1283 = vmatprep.subr.mxu0 0.0
        %1284 = vmatpush1.msra.mxu0 0.0
        %1285 = vmatprep.subr.mxu0 0.0
        %1286 = vmatpush1.msra.mxu0 0.0
        %1287 = vmatprep.subr.mxu0 0.0
        %1288 = vmatpush1.msra.mxu0 0.0
        %1289 = vmatprep.subr.mxu0 0.0
        %1290 = vmatpush1.msra.mxu0 0.0
        %1291 = vmatprep.subr.mxu0 0.0
        %1292 = vmatpush1.msra.mxu0 0.0
        %1293 = vmatprep.subr.mxu0 0.0
        %1294 = vmatpush1.msra.mxu0 0.0
        %1295 = vmatprep.subr.mxu0 0.0
        %1296 = vmatpush1.msra.mxu0 0.0
        %1297 = vmatprep.mubr.f32.mxu0 0.0
        %1298 = vmatmul.mubr.f32.gmra.mrb[0].mxu0 %v1231
        %v1299 = vpop.f32.mrb[0].mxu0
        %v1300 = vadd.f32 0.0, %v1299
        %v1301 = vpop.f32.mrb[0].mxu0
        %1302 = vdwg.mxu0
        %v1303 = vsel %vm993, %v1300, -inf
        %1304 = vmax.xlane.f32.xlu0 %v1303
        %v1305 = vpop.xlane.xlu0 %1304
        %v1306 = vsub.f32 %v1300, %v1305
        %v1307 = vmul.f32 %v1306, 1.442695
        %v1308 = vpow.pop %v1307
        %v1309 = vsel %vm993, %v1308, 0.0
        %1310 = vadd.xlane.f32.xlu0 %v1309
        %v1311 = vpop.xlane.xlu0 %1310
        %v1312 = vrcp.pop %v1311
        %v1313 = vmul.f32 %v1308, %v1312
        %s1314 = scalar_lea.vmem [#allocation3], 8
        %v1315 = vld [vmem:[%s1314] sm:$0xff]
        %v1317 = vsel %vm993, %v1313, 0
        %1319 = vmatprep.subr.mxu0 0.0
        %1320 = vmatpush1.msra.mxu0 %v1315
        %1321 = vmatprep.subr.mxu0 0.0
        %1322 = vmatpush1.msra.mxu0 0.0
        %1323 = vmatprep.subr.mxu0 0.0
        %1324 = vmatpush1.msra.mxu0 0.0
        %1325 = vmatprep.subr.mxu0 0.0
        %1326 = vmatpush1.msra.mxu0 0.0
        %1327 = vmatprep.subr.mxu0 0.0
        %1328 = vmatpush1.msra.mxu0 0.0
        %1329 = vmatprep.subr.mxu0 0.0
        %1330 = vmatpush1.msra.mxu0 0.0
        %1331 = vmatprep.subr.mxu0 0.0
        %1332 = vmatpush1.msra.mxu0 0.0
        %1333 = vmatprep.subr.mxu0 0.0
        %1334 = vmatpush1.msra.mxu0 0.0
        %1335 = vmatprep.subr.mxu0 0.0
        %1336 = vmatpush1.msra.mxu0 0.0
        %1337 = vmatprep.subr.mxu0 0.0
        %1338 = vmatpush1.msra.mxu0 0.0
        %1339 = vmatprep.subr.mxu0 0.0
        %1340 = vmatpush1.msra.mxu0 0.0
        %1341 = vmatprep.subr.mxu0 0.0
        %1342 = vmatpush1.msra.mxu0 0.0
        %1343 = vmatprep.subr.mxu0 0.0
        %1344 = vmatpush1.msra.mxu0 0.0
        %1345 = vmatprep.subr.mxu0 0.0
        %1346 = vmatpush1.msra.mxu0 0.0
        %1347 = vmatprep.subr.mxu0 0.0
        %1348 = vmatpush1.msra.mxu0 0.0
        %1349 = vmatprep.subr.mxu0 0.0
        %1350 = vmatpush1.msra.mxu0 0.0
        %1351 = vmatprep.subr.mxu0 0.0
        %1352 = vmatpush1.msra.mxu0 0.0
        %1353 = vmatprep.subr.mxu0 0.0
        %1354 = vmatpush1.msra.mxu0 0.0
        %1355 = vmatprep.subr.mxu0 0.0
        %1356 = vmatpush1.msra.mxu0 0.0
        %1357 = vmatprep.subr.mxu0 0.0
        %1358 = vmatpush1.msra.mxu0 0.0
        %1359 = vmatprep.subr.mxu0 0.0
        %1360 = vmatpush1.msra.mxu0 0.0
        %1361 = vmatprep.subr.mxu0 0.0
        %1362 = vmatpush1.msra.mxu0 0.0
        %1363 = vmatprep.subr.mxu0 0.0
        %1364 = vmatpush1.msra.mxu0 0.0
        %1365 = vmatprep.subr.mxu0 0.0
        %1366 = vmatpush1.msra.mxu0 0.0
        %1367 = vmatprep.subr.mxu0 0.0
        %1368 = vmatpush1.msra.mxu0 0.0
        %1369 = vmatprep.subr.mxu0 0.0
        %1370 = vmatpush1.msra.mxu0 0.0
        %1371 = vmatprep.subr.mxu0 0.0
        %1372 = vmatpush1.msra.mxu0 0.0
        %1373 = vmatprep.subr.mxu0 0.0
        %1374 = vmatpush1.msra.mxu0 0.0
        %1375 = vmatprep.subr.mxu0 0.0
        %1376 = vmatpush1.msra.mxu0 0.0
        %1377 = vmatprep.subr.mxu0 0.0
        %1378 = vmatpush1.msra.mxu0 0.0
        %1379 = vmatprep.subr.mxu0 0.0
        %1380 = vmatpush1.msra.mxu0 0.0
        %1381 = vmatprep.subr.mxu0 0.0
        %1382 = vmatpush1.msra.mxu0 0.0
        %1383 = vmatprep.mubr.f32.mxu0 0.0
        %1384 = vmatmul.mubr.f32.gmra.mrb[0].mxu0 %v1317
        %v1385 = vpop.f32.mrb[0].mxu0
        %v1386 = vadd.f32 0.0, %v1385
        %v1387 = vpop.f32.mrb[0].mxu0
        %1388 = vdwg.mxu0
        %v1389 = vld [vmem:[#allocation15 + $0x8] sm:$0xff]
        %v1391 = vsel %vm993, %v1386, 0
        %1393 = vmatprep.subr.mxu0 0.0
        %1394 = vmatpush1.msra.mxu0 %v1389
        %1395 = vmatprep.subr.mxu0 0.0
        %1396 = vmatpush1.msra.mxu0 0.0
        %1397 = vmatprep.subr.mxu0 0.0
        %1398 = vmatpush1.msra.mxu0 0.0
        %1399 = vmatprep.subr.mxu0 0.0
        %1400 = vmatpush1.msra.mxu0 0.0
        %1401 = vmatprep.subr.mxu0 0.0
        %1402 = vmatpush1.msra.mxu0 0.0
        %1403 = vmatprep.subr.mxu0 0.0
        %1404 = vmatpush1.msra.mxu0 0.0
        %1405 = vmatprep.subr.mxu0 0.0
        %1406 = vmatpush1.msra.mxu0 0.0
        %1407 = vmatprep.subr.mxu0 0.0
        %1408 = vmatpush1.msra.mxu0 0.0
        %1409 = vmatprep.subr.mxu0 0.0
        %1410 = vmatpush1.msra.mxu0 0.0
        %1411 = vmatprep.subr.mxu0 0.0
        %1412 = vmatpush1.msra.mxu0 0.0
        %1413 = vmatprep.subr.mxu0 0.0
        %1414 = vmatpush1.msra.mxu0 0.0
        %1415 = vmatprep.subr.mxu0 0.0
        %1416 = vmatpush1.msra.mxu0 0.0
        %1417 = vmatprep.subr.mxu0 0.0
        %1418 = vmatpush1.msra.mxu0 0.0
        %1419 = vmatprep.subr.mxu0 0.0
        %1420 = vmatpush1.msra.mxu0 0.0
        %1421 = vmatprep.subr.mxu0 0.0
        %1422 = vmatpush1.msra.mxu0 0.0
        %1423 = vmatprep.subr.mxu0 0.0
        %1424 = vmatpush1.msra.mxu0 0.0
        %1425 = vmatprep.subr.mxu0 0.0
        %1426 = vmatpush1.msra.mxu0 0.0
        %1427 = vmatprep.subr.mxu0 0.0
        %1428 = vmatpush1.msra.mxu0 0.0
        %1429 = vmatprep.subr.mxu0 0.0
        %1430 = vmatpush1.msra.mxu0 0.0
        %1431 = vmatprep.subr.mxu0 0.0
        %1432 = vmatpush1.msra.mxu0 0.0
        %1433 = vmatprep.subr.mxu0 0.0
        %1434 = vmatpush1.msra.mxu0 0.0
        %1435 = vmatprep.subr.mxu0 0.0
        %1436 = vmatpush1.msra.mxu0 0.0
        %1437 = vmatprep.subr.mxu0 0.0
        %1438 = vmatpush1.msra.mxu0 0.0
        %1439 = vmatprep.subr.mxu0 0.0
        %1440 = vmatpush1.msra.mxu0 0.0
        %1441 = vmatprep.subr.mxu0 0.0
        %1442 = vmatpush1.msra.mxu0 0.0
        %1443 = vmatprep.subr.mxu0 0.0
        %1444 = vmatpush1.msra.mxu0 0.0
        %1445 = vmatprep.subr.mxu0 0.0
        %1446 = vmatpush1.msra.mxu0 0.0
        %1447 = vmatprep.subr.mxu0 0.0
        %1448 = vmatpush1.msra.mxu0 0.0
        %1449 = vmatprep.subr.mxu0 0.0
        %1450 = vmatpush1.msra.mxu0 0.0
        %1451 = vmatprep.subr.mxu0 0.0
        %1452 = vmatpush1.msra.mxu0 0.0
        %1453 = vmatprep.subr.mxu0 0.0
        %1454 = vmatpush1.msra.mxu0 0.0
        %1455 = vmatprep.subr.mxu0 0.0
        %1456 = vmatpush1.msra.mxu0 0.0
        %1457 = vmatprep.mubr.f32.mxu0 0.0
        %1458 = vmatmul.mubr.f32.gmra.mrb[0].mxu0 %v1391
        %v1459 = vpop.f32.mrb[0].mxu0
        %v1460 = vadd.f32 0.0, %v1459
        %v1461 = vpop.f32.mrb[0].mxu0
        %1462 = vdwg.mxu0
        %v1463 = vadd.f32 %v1226, %v1460
        %s1464 = scalar_lea.vmem [#allocation2], 16
        %v1465 = vld [vmem:[%s1464] sm:$0xff]
        %1466 = vrot.lane.b32.xlu0 %v983, 112
        %v1467 = vpop.permute.xlu0 %1466
        %v1468 = vsel %vm993, %v1467, 0
        %1470 = vmatprep.subr.mxu0 0.0
        %1471 = vmatpush1.msra.mxu0 %v1465
        %1472 = vmatprep.subr.mxu0 0.0
        %1473 = vmatpush1.msra.mxu0 0.0
        %1474 = vmatprep.subr.mxu0 0.0
        %1475 = vmatpush1.msra.mxu0 0.0
        %1476 = vmatprep.subr.mxu0 0.0
        %1477 = vmatpush1.msra.mxu0 0.0
        %1478 = vmatprep.subr.mxu0 0.0
        %1479 = vmatpush1.msra.mxu0 0.0
        %1480 = vmatprep.subr.mxu0 0.0
        %1481 = vmatpush1.msra.mxu0 0.0
        %1482 = vmatprep.subr.mxu0 0.0
        %1483 = vmatpush1.msra.mxu0 0.0
        %1484 = vmatprep.subr.mxu0 0.0
        %1485 = vmatpush1.msra.mxu0 0.0
        %1486 = vmatprep.subr.mxu0 0.0
        %1487 = vmatpush1.msra.mxu0 0.0
        %1488 = vmatprep.subr.mxu0 0.0
        %1489 = vmatpush1.msra.mxu0 0.0
        %1490 = vmatprep.subr.mxu0 0.0
        %1491 = vmatpush1.msra.mxu0 0.0
        %1492 = vmatprep.subr.mxu0 0.0
        %1493 = vmatpush1.msra.mxu0 0.0
        %1494 = vmatprep.subr.mxu0 0.0
        %1495 = vmatpush1.msra.mxu0 0.0
        %1496 = vmatprep.subr.mxu0 0.0
        %1497 = vmatpush1.msra.mxu0 0.0
        %1498 = vmatprep.subr.mxu0 0.0
        %1499 = vmatpush1.msra.mxu0 0.0
        %1500 = vmatprep.subr.mxu0 0.0
        %1501 = vmatpush1.msra.mxu0 0.0
        %1502 = vmatprep.subr.mxu0 0.0
        %1503 = vmatpush1.msra.mxu0 0.0
        %1504 = vmatprep.subr.mxu0 0.0
        %1505 = vmatpush1.msra.mxu0 0.0
        %1506 = vmatprep.subr.mxu0 0.0
        %1507 = vmatpush1.msra.mxu0 0.0
        %1508 = vmatprep.subr.mxu0 0.0
        %1509 = vmatpush1.msra.mxu0 0.0
        %1510 = vmatprep.subr.mxu0 0.0
        %1511 = vmatpush1.msra.mxu0 0.0
        %1512 = vmatprep.subr.mxu0 0.0
        %1513 = vmatpush1.msra.mxu0 0.0
        %1514 = vmatprep.subr.mxu0 0.0
        %1515 = vmatpush1.msra.mxu0 0.0
        %1516 = vmatprep.subr.mxu0 0.0
        %1517 = vmatpush1.msra.mxu0 0.0
        %1518 = vmatprep.subr.mxu0 0.0
        %1519 = vmatpush1.msra.mxu0 0.0
        %1520 = vmatprep.subr.mxu0 0.0
        %1521 = vmatpush1.msra.mxu0 0.0
        %1522 = vmatprep.subr.mxu0 0.0
        %1523 = vmatpush1.msra.mxu0 0.0
        %1524 = vmatprep.subr.mxu0 0.0
        %1525 = vmatpush1.msra.mxu0 0.0
        %1526 = vmatprep.subr.mxu0 0.0
        %1527 = vmatpush1.msra.mxu0 0.0
        %1528 = vmatprep.subr.mxu0 0.0
        %1529 = vmatpush1.msra.mxu0 0.0
        %1530 = vmatprep.subr.mxu0 0.0
        %1531 = vmatpush1.msra.mxu0 0.0
        %1532 = vmatprep.subr.mxu0 0.0
        %1533 = vmatpush1.msra.mxu0 0.0
        %1534 = vmatprep.mubr.f32.mxu0 0.0
        %1535 = vmatmul.mubr.f32.gmra.mrb[0].mxu0 %v1468
        %v1536 = vpop.f32.mrb[0].mxu0
        %v1537 = vadd.f32 0.0, %v1536
        %v1538 = vpop.f32.mrb[0].mxu0
        %1539 = vdwg.mxu0
        %v1540 = vsel %vm993, %v1537, -inf
        %1541 = vmax.xlane.f32.xlu0 %v1540
        %v1542 = vpop.xlane.xlu0 %1541
        %v1543 = vsub.f32 %v1537, %v1542
        %v1544 = vmul.f32 %v1543, 1.442695
        %v1545 = vpow.pop %v1544
        %v1546 = vsel %vm993, %v1545, 0.0
        %1547 = vadd.xlane.f32.xlu0 %v1546
        %v1548 = vpop.xlane.xlu0 %1547
        %v1549 = vrcp.pop %v1548
        %v1550 = vmul.f32 %v1545, %v1549
        %s1551 = scalar_lea.vmem [#allocation3], 16
        %v1552 = vld [vmem:[%s1551] sm:$0xff]
        %v1554 = vsel %vm993, %v1550, 0
        %1556 = vmatprep.subr.mxu0 0.0
        %1557 = vmatpush1.msra.mxu0 %v1552
        %1558 = vmatprep.subr.mxu0 0.0
        %1559 = vmatpush1.msra.mxu0 0.0
        %1560 = vmatprep.subr.mxu0 0.0
        %1561 = vmatpush1.msra.mxu0 0.0
        %1562 = vmatprep.subr.mxu0 0.0
        %1563 = vmatpush1.msra.mxu0 0.0
        %1564 = vmatprep.subr.mxu0 0.0
        %1565 = vmatpush1.msra.mxu0 0.0
        %1566 = vmatprep.subr.mxu0 0.0
        %1567 = vmatpush1.msra.mxu0 0.0
        %1568 = vmatprep.subr.mxu0 0.0
        %1569 = vmatpush1.msra.mxu0 0.0
        %1570 = vmatprep.subr.mxu0 0.0
        %1571 = vmatpush1.msra.mxu0 0.0
        %1572 = vmatprep.subr.mxu0 0.0
        %1573 = vmatpush1.msra.mxu0 0.0
        %1574 = vmatprep.subr.mxu0 0.0
        %1575 = vmatpush1.msra.mxu0 0.0
        %1576 = vmatprep.subr.mxu0 0.0
        %1577 = vmatpush1.msra.mxu0 0.0
        %1578 = vmatprep.subr.mxu0 0.0
        %1579 = vmatpush1.msra.mxu0 0.0
        %1580 = vmatprep.subr.mxu0 0.0
        %1581 = vmatpush1.msra.mxu0 0.0
        %1582 = vmatprep.subr.mxu0 0.0
        %1583 = vmatpush1.msra.mxu0 0.0
        %1584 = vmatprep.subr.mxu0 0.0
        %1585 = vmatpush1.msra.mxu0 0.0
        %1586 = vmatprep.subr.mxu0 0.0
        %1587 = vmatpush1.msra.mxu0 0.0
        %1588 = vmatprep.subr.mxu0 0.0
        %1589 = vmatpush1.msra.mxu0 0.0
        %1590 = vmatprep.subr.mxu0 0.0
        %1591 = vmatpush1.msra.mxu0 0.0
        %1592 = vmatprep.subr.mxu0 0.0
        %1593 = vmatpush1.msra.mxu0 0.0
        %1594 = vmatprep.subr.mxu0 0.0
        %1595 = vmatpush1.msra.mxu0 0.0
        %1596 = vmatprep.subr.mxu0 0.0
        %1597 = vmatpush1.msra.mxu0 0.0
        %1598 = vmatprep.subr.mxu0 0.0
        %1599 = vmatpush1.msra.mxu0 0.0
        %1600 = vmatprep.subr.mxu0 0.0
        %1601 = vmatpush1.msra.mxu0 0.0
        %1602 = vmatprep.subr.mxu0 0.0
        %1603 = vmatpush1.msra.mxu0 0.0
        %1604 = vmatprep.subr.mxu0 0.0
        %1605 = vmatpush1.msra.mxu0 0.0
        %1606 = vmatprep.subr.mxu0 0.0
        %1607 = vmatpush1.msra.mxu0 0.0
        %1608 = vmatprep.subr.mxu0 0.0
        %1609 = vmatpush1.msra.mxu0 0.0
        %1610 = vmatprep.subr.mxu0 0.0
        %1611 = vmatpush1.msra.mxu0 0.0
        %1612 = vmatprep.subr.mxu0 0.0
        %1613 = vmatpush1.msra.mxu0 0.0
        %1614 = vmatprep.subr.mxu0 0.0
        %1615 = vmatpush1.msra.mxu0 0.0
        %1616 = vmatprep.subr.mxu0 0.0
        %1617 = vmatpush1.msra.mxu0 0.0
        %1618 = vmatprep.subr.mxu0 0.0
        %1619 = vmatpush1.msra.mxu0 0.0
        %1620 = vmatprep.mubr.f32.mxu0 0.0
        %1621 = vmatmul.mubr.f32.gmra.mrb[0].mxu0 %v1554
        %v1622 = vpop.f32.mrb[0].mxu0
        %v1623 = vadd.f32 0.0, %v1622
        %v1624 = vpop.f32.mrb[0].mxu0
        %1625 = vdwg.mxu0
        %v1626 = vld [vmem:[#allocation15 + $0x10] sm:$0xff]
        %v1628 = vsel %vm993, %v1623, 0
        %1630 = vmatprep.subr.mxu0 0.0
        %1631 = vmatpush1.msra.mxu0 %v1626
        %1632 = vmatprep.subr.mxu0 0.0
        %1633 = vmatpush1.msra.mxu0 0.0
        %1634 = vmatprep.subr.mxu0 0.0
        %1635 = vmatpush1.msra.mxu0 0.0
        %1636 = vmatprep.subr.mxu0 0.0
        %1637 = vmatpush1.msra.mxu0 0.0
        %1638 = vmatprep.subr.mxu0 0.0
        %1639 = vmatpush1.msra.mxu0 0.0
        %1640 = vmatprep.subr.mxu0 0.0
        %1641 = vmatpush1.msra.mxu0 0.0
        %1642 = vmatprep.subr.mxu0 0.0
        %1643 = vmatpush1.msra.mxu0 0.0
        %1644 = vmatprep.subr.mxu0 0.0
        %1645 = vmatpush1.msra.mxu0 0.0
        %1646 = vmatprep.subr.mxu0 0.0
        %1647 = vmatpush1.msra.mxu0 0.0
        %1648 = vmatprep.subr.mxu0 0.0
        %1649 = vmatpush1.msra.mxu0 0.0
        %1650 = vmatprep.subr.mxu0 0.0
        %1651 = vmatpush1.msra.mxu0 0.0
        %1652 = vmatprep.subr.mxu0 0.0
        %1653 = vmatpush1.msra.mxu0 0.0
        %1654 = vmatprep.subr.mxu0 0.0
        %1655 = vmatpush1.msra.mxu0 0.0
        %1656 = vmatprep.subr.mxu0 0.0
        %1657 = vmatpush1.msra.mxu0 0.0
        %1658 = vmatprep.subr.mxu0 0.0
        %1659 = vmatpush1.msra.mxu0 0.0
        %1660 = vmatprep.subr.mxu0 0.0
        %1661 = vmatpush1.msra.mxu0 0.0
        %1662 = vmatprep.subr.mxu0 0.0
        %1663 = vmatpush1.msra.mxu0 0.0
        %1664 = vmatprep.subr.mxu0 0.0
        %1665 = vmatpush1.msra.mxu0 0.0
        %1666 = vmatprep.subr.mxu0 0.0
        %1667 = vmatpush1.msra.mxu0 0.0
        %1668 = vmatprep.subr.mxu0 0.0
        %1669 = vmatpush1.msra.mxu0 0.0
        %1670 = vmatprep.subr.mxu0 0.0
        %1671 = vmatpush1.msra.mxu0 0.0
        %1672 = vmatprep.subr.mxu0 0.0
        %1673 = vmatpush1.msra.mxu0 0.0
        %1674 = vmatprep.subr.mxu0 0.0
        %1675 = vmatpush1.msra.mxu0 0.0
        %1676 = vmatprep.subr.mxu0 0.0
        %1677 = vmatpush1.msra.mxu0 0.0
        %1678 = vmatprep.subr.mxu0 0.0
        %1679 = vmatpush1.msra.mxu0 0.0
        %1680 = vmatprep.subr.mxu0 0.0
        %1681 = vmatpush1.msra.mxu0 0.0
        %1682 = vmatprep.subr.mxu0 0.0
        %1683 = vmatpush1.msra.mxu0 0.0
        %1684 = vmatprep.subr.mxu0 0.0
        %1685 = vmatpush1.msra.mxu0 0.0
        %1686 = vmatprep.subr.mxu0 0.0
        %1687 = vmatpush1.msra.mxu0 0.0
        %1688 = vmatprep.subr.mxu0 0.0
        %1689 = vmatpush1.msra.mxu0 0.0
        %1690 = vmatprep.subr.mxu0 0.0
        %1691 = vmatpush1.msra.mxu0 0.0
        %1692 = vmatprep.subr.mxu0 0.0
        %1693 = vmatpush1.msra.mxu0 0.0
        %1694 = vmatprep.mubr.f32.mxu0 0.0
        %1695 = vmatmul.mubr.f32.gmra.mrb[0].mxu0 %v1628
        %v1696 = vpop.f32.mrb[0].mxu0
        %v1697 = vadd.f32 0.0, %v1696
        %v1698 = vpop.f32.mrb[0].mxu0
        %1699 = vdwg.mxu0
        %v1700 = vadd.f32 %v1463, %v1697
        %s1701 = scalar_lea.vmem [#allocation2], 24
        %v1702 = vld [vmem:[%s1701] sm:$0xff]
        %1703 = vrot.lane.b32.xlu0 %v983, 104
        %v1704 = vpop.permute.xlu0 %1703
        %v1705 = vsel %vm993, %v1704, 0
        %1707 = vmatprep.subr.mxu0 0.0
        %1708 = vmatpush1.msra.mxu0 %v1702
        %1709 = vmatprep.subr.mxu0 0.0
        %1710 = vmatpush1.msra.mxu0 0.0
        %1711 = vmatprep.subr.mxu0 0.0
        %1712 = vmatpush1.msra.mxu0 0.0
        %1713 = vmatprep.subr.mxu0 0.0
        %1714 = vmatpush1.msra.mxu0 0.0
        %1715 = vmatprep.subr.mxu0 0.0
        %1716 = vmatpush1.msra.mxu0 0.0
        %1717 = vmatprep.subr.mxu0 0.0
        %1718 = vmatpush1.msra.mxu0 0.0
        %1719 = vmatprep.subr.mxu0 0.0
        %1720 = vmatpush1.msra.mxu0 0.0
        %1721 = vmatprep.subr.mxu0 0.0
        %1722 = vmatpush1.msra.mxu0 0.0
        %1723 = vmatprep.subr.mxu0 0.0
        %1724 = vmatpush1.msra.mxu0 0.0
        %1725 = vmatprep.subr.mxu0 0.0
        %1726 = vmatpush1.msra.mxu0 0.0
        %1727 = vmatprep.subr.mxu0 0.0
        %1728 = vmatpush1.msra.mxu0 0.0
        %1729 = vmatprep.subr.mxu0 0.0
        %1730 = vmatpush1.msra.mxu0 0.0
        %1731 = vmatprep.subr.mxu0 0.0
        %1732 = vmatpush1.msra.mxu0 0.0
        %1733 = vmatprep.subr.mxu0 0.0
        %1734 = vmatpush1.msra.mxu0 0.0
        %1735 = vmatprep.subr.mxu0 0.0
        %1736 = vmatpush1.msra.mxu0 0.0
        %1737 = vmatprep.subr.mxu0 0.0
        %1738 = vmatpush1.msra.mxu0 0.0
        %1739 = vmatprep.subr.mxu0 0.0
        %1740 = vmatpush1.msra.mxu0 0.0
        %1741 = vmatprep.subr.mxu0 0.0
        %1742 = vmatpush1.msra.mxu0 0.0
        %1743 = vmatprep.subr.mxu0 0.0
        %1744 = vmatpush1.msra.mxu0 0.0
        %1745 = vmatprep.subr.mxu0 0.0
        %1746 = vmatpush1.msra.mxu0 0.0
        %1747 = vmatprep.subr.mxu0 0.0
        %1748 = vmatpush1.msra.mxu0 0.0
        %1749 = vmatprep.subr.mxu0 0.0
        %1750 = vmatpush1.msra.mxu0 0.0
        %1751 = vmatprep.subr.mxu0 0.0
        %1752 = vmatpush1.msra.mxu0 0.0
        %1753 = vmatprep.subr.mxu0 0.0
        %1754 = vmatpush1.msra.mxu0 0.0
        %1755 = vmatprep.subr.mxu0 0.0
        %1756 = vmatpush1.msra.mxu0 0.0
        %1757 = vmatprep.subr.mxu0 0.0
        %1758 = vmatpush1.msra.mxu0 0.0
        %1759 = vmatprep.subr.mxu0 0.0
        %1760 = vmatpush1.msra.mxu0 0.0
        %1761 = vmatprep.subr.mxu0 0.0
        %1762 = vmatpush1.msra.mxu0 0.0
        %1763 = vmatprep.subr.mxu0 0.0
        %1764 = vmatpush1.msra.mxu0 0.0
        %1765 = vmatprep.subr.mxu0 0.0
        %1766 = vmatpush1.msra.mxu0 0.0
        %1767 = vmatprep.subr.mxu0 0.0
        %1768 = vmatpush1.msra.mxu0 0.0
        %1769 = vmatprep.subr.mxu0 0.0
        %1770 = vmatpush1.msra.mxu0 0.0
        %1771 = vmatprep.mubr.f32.mxu0 0.0
        %1772 = vmatmul.mubr.f32.gmra.mrb[0].mxu0 %v1705
        %v1773 = vpop.f32.mrb[0].mxu0
        %v1774 = vadd.f32 0.0, %v1773
        %v1775 = vpop.f32.mrb[0].mxu0
        %1776 = vdwg.mxu0
        %v1777 = vsel %vm993, %v1774, -inf
        %1778 = vmax.xlane.f32.xlu0 %v1777
        %v1779 = vpop.xlane.xlu0 %1778
        %v1780 = vsub.f32 %v1774, %v1779
        %v1781 = vmul.f32 %v1780, 1.442695
        %v1782 = vpow.pop %v1781
        %v1783 = vsel %vm993, %v1782, 0.0
        %1784 = vadd.xlane.f32.xlu0 %v1783
        %v1785 = vpop.xlane.xlu0 %1784
        %v1786 = vrcp.pop %v1785
        %v1787 = vmul.f32 %v1782, %v1786
        %s1788 = scalar_lea.vmem [#allocation3], 24
        %v1789 = vld [vmem:[%s1788] sm:$0xff]
        %v1791 = vsel %vm993, %v1787, 0
        %1793 = vmatprep.subr.mxu0 0.0
        %1794 = vmatpush1.msra.mxu0 %v1789
        %1795 = vmatprep.subr.mxu0 0.0
        %1796 = vmatpush1.msra.mxu0 0.0
        %1797 = vmatprep.subr.mxu0 0.0
        %1798 = vmatpush1.msra.mxu0 0.0
        %1799 = vmatprep.subr.mxu0 0.0
        %1800 = vmatpush1.msra.mxu0 0.0
        %1801 = vmatprep.subr.mxu0 0.0
        %1802 = vmatpush1.msra.mxu0 0.0
        %1803 = vmatprep.subr.mxu0 0.0
        %1804 = vmatpush1.msra.mxu0 0.0
        %1805 = vmatprep.subr.mxu0 0.0
        %1806 = vmatpush1.msra.mxu0 0.0
        %1807 = vmatprep.subr.mxu0 0.0
        %1808 = vmatpush1.msra.mxu0 0.0
        %1809 = vmatprep.subr.mxu0 0.0
        %1810 = vmatpush1.msra.mxu0 0.0
        %1811 = vmatprep.subr.mxu0 0.0
        %1812 = vmatpush1.msra.mxu0 0.0
        %1813 = vmatprep.subr.mxu0 0.0
        %1814 = vmatpush1.msra.mxu0 0.0
        %1815 = vmatprep.subr.mxu0 0.0
        %1816 = vmatpush1.msra.mxu0 0.0
        %1817 = vmatprep.subr.mxu0 0.0
        %1818 = vmatpush1.msra.mxu0 0.0
        %1819 = vmatprep.subr.mxu0 0.0
        %1820 = vmatpush1.msra.mxu0 0.0
        %1821 = vmatprep.subr.mxu0 0.0
        %1822 = vmatpush1.msra.mxu0 0.0
        %1823 = vmatprep.subr.mxu0 0.0
        %1824 = vmatpush1.msra.mxu0 0.0
        %1825 = vmatprep.subr.mxu0 0.0
        %1826 = vmatpush1.msra.mxu0 0.0
        %1827 = vmatprep.subr.mxu0 0.0
        %1828 = vmatpush1.msra.mxu0 0.0
        %1829 = vmatprep.subr.mxu0 0.0
        %1830 = vmatpush1.msra.mxu0 0.0
        %1831 = vmatprep.subr.mxu0 0.0
        %1832 = vmatpush1.msra.mxu0 0.0
        %1833 = vmatprep.subr.mxu0 0.0
        %1834 = vmatpush1.msra.mxu0 0.0
        %1835 = vmatprep.subr.mxu0 0.0
        %1836 = vmatpush1.msra.mxu0 0.0
        %1837 = vmatprep.subr.mxu0 0.0
        %1838 = vmatpush1.msra.mxu0 0.0
        %1839 = vmatprep.subr.mxu0 0.0
        %1840 = vmatpush1.msra.mxu0 0.0
        %1841 = vmatprep.subr.mxu0 0.0
        %1842 = vmatpush1.msra.mxu0 0.0
        %1843 = vmatprep.subr.mxu0 0.0
        %1844 = vmatpush1.msra.mxu0 0.0
        %1845 = vmatprep.subr.mxu0 0.0
        %1846 = vmatpush1.msra.mxu0 0.0
        %1847 = vmatprep.subr.mxu0 0.0
        %1848 = vmatpush1.msra.mxu0 0.0
        %1849 = vmatprep.subr.mxu0 0.0
        %1850 = vmatpush1.msra.mxu0 0.0
        %1851 = vmatprep.subr.mxu0 0.0
        %1852 = vmatpush1.msra.mxu0 0.0
        %1853 = vmatprep.subr.mxu0 0.0
        %1854 = vmatpush1.msra.mxu0 0.0
        %1855 = vmatprep.subr.mxu0 0.0
        %1856 = vmatpush1.msra.mxu0 0.0
        %1857 = vmatprep.mubr.f32.mxu0 0.0
        %1858 = vmatmul.mubr.f32.gmra.mrb[0].mxu0 %v1791
        %v1859 = vpop.f32.mrb[0].mxu0
        %v1860 = vadd.f32 0.0, %v1859
        %v1861 = vpop.f32.mrb[0].mxu0
        %1862 = vdwg.mxu0
        %v1863 = vld [vmem:[#allocation15 + $0x18] sm:$0xff]
        %v1865 = vsel %vm993, %v1860, 0
        %1867 = vmatprep.subr.mxu0 0.0
        %1868 = vmatpush1.msra.mxu0 %v1863
        %1869 = vmatprep.subr.mxu0 0.0
        %1870 = vmatpush1.msra.mxu0 0.0
        %1871 = vmatprep.subr.mxu0 0.0
        %1872 = vmatpush1.msra.mxu0 0.0
        %1873 = vmatprep.subr.mxu0 0.0
        %1874 = vmatpush1.msra.mxu0 0.0
        %1875 = vmatprep.subr.mxu0 0.0
        %1876 = vmatpush1.msra.mxu0 0.0
        %1877 = vmatprep.subr.mxu0 0.0
        %1878 = vmatpush1.msra.mxu0 0.0
        %1879 = vmatprep.subr.mxu0 0.0
        %1880 = vmatpush1.msra.mxu0 0.0
        %1881 = vmatprep.subr.mxu0 0.0
        %1882 = vmatpush1.msra.mxu0 0.0
        %1883 = vmatprep.subr.mxu0 0.0
        %1884 = vmatpush1.msra.mxu0 0.0
        %1885 = vmatprep.subr.mxu0 0.0
        %1886 = vmatpush1.msra.mxu0 0.0
        %1887 = vmatprep.subr.mxu0 0.0
        %1888 = vmatpush1.msra.mxu0 0.0
        %1889 = vmatprep.subr.mxu0 0.0
        %1890 = vmatpush1.msra.mxu0 0.0
        %1891 = vmatprep.subr.mxu0 0.0
        %1892 = vmatpush1.msra.mxu0 0.0
        %1893 = vmatprep.subr.mxu0 0.0
        %1894 = vmatpush1.msra.mxu0 0.0
        %1895 = vmatprep.subr.mxu0 0.0
        %1896 = vmatpush1.msra.mxu0 0.0
        %1897 = vmatprep.subr.mxu0 0.0
        %1898 = vmatpush1.msra.mxu0 0.0
        %1899 = vmatprep.subr.mxu0 0.0
        %1900 = vmatpush1.msra.mxu0 0.0
        %1901 = vmatprep.subr.mxu0 0.0
        %1902 = vmatpush1.msra.mxu0 0.0
        %1903 = vmatprep.subr.mxu0 0.0
        %1904 = vmatpush1.msra.mxu0 0.0
        %1905 = vmatprep.subr.mxu0 0.0
        %1906 = vmatpush1.msra.mxu0 0.0
        %1907 = vmatprep.subr.mxu0 0.0
        %1908 = vmatpush1.msra.mxu0 0.0
        %1909 = vmatprep.subr.mxu0 0.0
        %1910 = vmatpush1.msra.mxu0 0.0
        %1911 = vmatprep.subr.mxu0 0.0
        %1912 = vmatpush1.msra.mxu0 0.0
        %1913 = vmatprep.subr.mxu0 0.0
        %1914 = vmatpush1.msra.mxu0 0.0
        %1915 = vmatprep.subr.mxu0 0.0
        %1916 = vmatpush1.msra.mxu0 0.0
        %1917 = vmatprep.subr.mxu0 0.0
        %1918 = vmatpush1.msra.mxu0 0.0
        %1919 = vmatprep.subr.mxu0 0.0
        %1920 = vmatpush1.msra.mxu0 0.0
        %1921 = vmatprep.subr.mxu0 0.0
        %1922 = vmatpush1.msra.mxu0 0.0
        %1923 = vmatprep.subr.mxu0 0.0
        %1924 = vmatpush1.msra.mxu0 0.0
        %1925 = vmatprep.subr.mxu0 0.0
        %1926 = vmatpush1.msra.mxu0 0.0
        %1927 = vmatprep.subr.mxu0 0.0
        %1928 = vmatpush1.msra.mxu0 0.0
        %1929 = vmatprep.subr.mxu0 0.0
        %1930 = vmatpush1.msra.mxu0 0.0
        %1931 = vmatprep.mubr.f32.mxu0 0.0
        %1932 = vmatmul.mubr.f32.gmra.mrb[0].mxu0 %v1865
        %v1933 = vpop.f32.mrb[0].mxu0
        %v1934 = vadd.f32 0.0, %v1933
        %v1935 = vpop.f32.mrb[0].mxu0
        %1936 = vdwg.mxu0
        %v1937 = vadd.f32 %v1700, %v1934
        %1938 = vst.msk [vmem:[%s558] sm:$0xff] %vm909, %v1937
        %s1939 = sand.u32 %s304, 1
        %s1940 = scalar_lea.sflag [#allocation6], %s1939
        %s1941 = sand.u32 %s304, 1
        %s1942 = smul.addr %s1941, 8
        %s1943 = scalar_lea.vmem [#allocation18], %s1942
        // Predicated region
        $region101: #{mha_forward.1} parent=63 // pred_check
          %p1944 = pneg %p314
        $region102: #{mha_forward.1} parent=63 // pred_check_branch
          %1946 = sbr.rel (%p1944) target = $region104
        $region103: #{mha_forward.1} parent=63 // pred_region
          %s1948 = ssub.s32 128, 128
          %1949 = vsyncadd %s1940, %s1948
          %s1950 = sadd.s32 %s39, %s38
          %s1951 = smul.addr %s1950, 128
          %s1952 = scalar_lea.hbm %s11, %s1951
          %s1954 = sshll.u32 %s1943, 4
          %s1955 = int_to_ptr.vmem [resolvable:$true] %s1954
          %1957 = dma.vmem_to_hbm [thread:$0]  %s1955, 128, %s1952, %s1940
        $region104: #{mha_forward.1} parent=63 // pred_fallthru
          _
      $region64: #{mha_forward.1} parent=5 // pred_fallthru
        _
      %p1958 = scmp.le.s32.totalorder 2, %s29
      // Predicated region
      $region105: #{mha_forward.1} parent=5 // pred_check
        %p1959 = pneg %p1958
      $region106: #{mha_forward.1} parent=5 // pred_check_branch
        %1961 = sbr.rel (%p1959) target = $region108
      $region107: #{mha_forward.1} parent=5 // pred_region
        %s1962 = ssub.s32 %s29, 2
        // Predicated region
        $region109: #{mha_forward.1} parent=107 // pred_check
          %p1963 = pneg %p320
        $region110: #{mha_forward.1} parent=107 // pred_check_branch
          %1965 = sbr.rel (%p1963) target = $region112
        $region111: #{mha_forward.1} parent=107 // pred_region
          %s1966 = sand.u32 %s305, 1
          %s1967 = scalar_lea.sflag [#allocation6], %s1966
          %s1968 = sand.u32 %s305, 1
          %s1969 = smul.addr %s1968, 8
          %s1970 = scalar_lea.vmem [#allocation18], %s1969
          %1971 = dma.done %s1967, 128
        $region112: #{mha_forward.1} parent=107 // pred_fallthru
          _
      $region108: #{mha_forward.1} parent=5 // pred_fallthru
        _
    $region6: #{mha_forward.1} parent=1 // loop_footer
      %s33 = sadd.s32 1, %s29
    $region7: #{mha_forward.1} parent=1 // loop_footer_branch
      %28 = sbr.rel target = $region3
    $region8: #{mha_forward.1} parent=1 // loop_exit
      _
    %1972 = vsyncpa [#allocation5], 1
    %s1973 = scalar_lea.sflag [#allocation5], 1
    %1974 = vsyncpa %s1973, 1
    %1975 = vsyncpa [#allocation8], 1
    %s1976 = scalar_lea.sflag [#allocation8], 1
    %1977 = vsyncpa %s1976, 1
    %1978 = vsyncpa [#allocation11], 1
    %1979 = vsyncpa [#allocation14], 1
    %1980 = vsyncpa [#allocation17], 1
    %1981 = vsyncpa [#allocation6], 1
    %s1982 = scalar_lea.sflag [#allocation6], 1
    %1983 = vsyncpa %s1982, 1

</llo_original>
